<compile_context>
chip_gen: v7x
topology: tpu7x:2x2x1
jax: 0.10.0
libtpu: 0.0.40
codegen_flags: <defaults>
</compile_context>

<pallas_src>
import functools

import jax
import jax.numpy as jnp
from jax.experimental import pallas as pl
from jax.experimental.pallas import tpu as pltpu

LANE = 128
SUBLANE = 16          # bf16 sublane packing; also satisfies f32's 8
VMEM_SAFE_TILE = 2048  # ~3 KB/row working set -> ~6-8 MiB @ 2048 rows, fits all gens


def _leaky_relu(x, negative_slope=0.01):
    return jnp.where(x > 0, x, negative_slope * x)


def _round_up(n, m):
    return pl.cdiv(n, m) * m


def _pick_batch_tile(batch, cap=VMEM_SAFE_TILE):
    """Largest sublane-aligned tile <= cap giving an even number of grid steps."""
    n_steps = max(2, 2 * pl.cdiv(batch, 2 * cap))       # even step count
    tile = _round_up(pl.cdiv(batch, n_steps), SUBLANE)
    return max(SUBLANE, min(tile, cap))


def theta_kernel(x_ref, w_in_ref, b_in_ref, w_h_ref, b_h_ref,
                 gamma_ref, beta_ref, w_out_ref, b_out_ref, out_ref,
                 *, num_hidden, hidden_real):
    """One batch tile of the full forward pass (all feature dims lane-padded)."""
    inv_h = 1.0 / float(hidden_real)

    # Input projection (bf16 MXU, f32 accumulate) + bias + LeakyReLU (f32).
    h = jnp.dot(x_ref[...], w_in_ref[...], preferred_element_type=jnp.float32)
    h = _leaky_relu(h + b_in_ref[...])

    # Hidden blocks: Linear -> (Dropout = identity) -> LayerNorm, then LeakyReLU.
    # Small static L -> Python unroll; switch to lax.fori_loop(unroll=True) if
    # num_hidden grows large (bounds vreg live ranges / code size).
    for l in range(num_hidden):
        z = jnp.dot(h.astype(w_h_ref.dtype), w_h_ref[l],
                    preferred_element_type=jnp.float32) + b_h_ref[l]
        # One-pass LayerNorm stats.  Padded lanes of z are exactly zero (zero
        # weight columns / biases), so summing over all 128 lanes and dividing
        # by the real hidden width gives exact statistics over 'hidden_real'.
        s1 = jnp.sum(z, axis=-1, keepdims=True)
        s2 = jnp.sum(z * z, axis=-1, keepdims=True)
        mu = s1 * inv_h
        var = s2 * inv_h - mu * mu
        zn = (z - mu) * jax.lax.rsqrt(var + 1e-5)
        # gamma/beta are zero on padded lanes -> h stays exactly zero there.
        h = _leaky_relu(zn * gamma_ref[l] + beta_ref[l])

    # Output head: Linear(hidden, out_dim * num_params), lane-padded to 128.
    y = jnp.dot(h.astype(w_out_ref.dtype), w_out_ref[...],
                preferred_element_type=jnp.float32) + b_out_ref[...]
    out_ref[...] = y.astype(out_ref.dtype)   # bf16 store -> half the writeback


def _full_spec(shape):
    """Whole-array resident block (same block for every grid step)."""
    n = len(shape)
    return pl.BlockSpec(shape, lambda i, n=n: (0,) * n)


def pad_and_cast_params(params, hidden_dim, out_dim, num_params, lane=LANE):
    """Permute output columns to param-major, zero-pad feature axes to the lane
    width; matmul weights -> bf16, biases / LayerNorm params stay f32."""
    out_feat = out_dim * num_params
    h_pad = _round_up(hidden_dim, lane)
    o_pad = _round_up(out_feat, lane)
    bf = jnp.bfloat16

    def pad_last(a, n):
        return jnp.pad(a, [(0, 0)] * (a.ndim - 1) + [(0, n - a.shape[-1])])

    def pad_last2(a, n2, n1):
        pads = ([(0, 0)] * (a.ndim - 2)
                + [(0, n2 - a.shape[-2]), (0, n1 - a.shape[-1])])
        return jnp.pad(a, pads)

    # PyTorch: reshape(B, out_dim, num_params).chunk(num_params, -1)
    #   -> param p, feature j comes from linear column j*num_params + p.
    # Permute columns so the kernel emits param-major (p*out_dim + j) order,
    # making the host-side split a contiguous slice.
    perm = jnp.asarray([j * num_params + p
                        for p in range(num_params) for j in range(out_dim)],
                       dtype=jnp.int32)
    w_out = params["w_out"][:, perm]
    b_out = params["b_out"][..., perm]

    return dict(
        w_in=pad_last(params["w_in"], h_pad).astype(bf),        # (in_dim, Hp) bf16
        b_in=pad_last(params["b_in"], h_pad),                    # (1, Hp) f32
        w_h=pad_last2(params["w_h"], h_pad, h_pad).astype(bf),   # (L, Hp, Hp) bf16
        b_h=pad_last(params["b_h"], h_pad),                      # (L, 1, Hp) f32
        gamma=pad_last(params["gamma"], h_pad),                  # padded lanes = 0
        beta=pad_last(params["beta"], h_pad),                    # padded lanes = 0
        w_out=pad_last2(w_out, h_pad, o_pad).astype(bf),         # (Hp, Op) bf16
        b_out=pad_last(b_out, o_pad),                            # (1, Op) f32
    )


def theta_forward(x, params, *, num_hidden, hidden_dim, out_dim, num_params,
                  batch_tile=None):
    """Full ThetaNetwork forward; returns a list of num_params (B, out_dim) arrays."""
    B, in_dim = x.shape
    out_feat = out_dim * num_params
    o_pad = _round_up(out_feat, LANE)

    if batch_tile is None:
        batch_tile = _pick_batch_tile(B)
    assert batch_tile % SUBLANE == 0, "batch_tile must be sublane-aligned (mult of 16)"

    # Host-side prep: permute/pad/cast params, cast & batch-pad x.
    pp = pad_and_cast_params(params, hidden_dim, out_dim, num_params)
    b_pad = _round_up(B, batch_tile)
    x_p = x
    if b_pad != B:
        x_p = jnp.pad(x, ((0, b_pad - B), (0, 0)))
    x_p = x_p.astype(jnp.bfloat16)   # matches MXU input dtype; x stream is tiny anyway

    kern = functools.partial(theta_kernel, num_hidden=num_hidden,
                             hidden_real=hidden_dim)

    grid = (b_pad // batch_tile,)
    y = pl.pallas_call(
        kern,
        out_shape=jax.ShapeDtypeStruct((b_pad, o_pad), jnp.bfloat16),
        grid=grid,
        in_specs=[
            pl.BlockSpec((batch_tile, in_dim), lambda i: (i, 0)),  # x: streamed
            _full_spec(pp["w_in"].shape),
            _full_spec(pp["b_in"].shape),
            _full_spec(pp["w_h"].shape),
            _full_spec(pp["b_h"].shape),
            _full_spec(pp["gamma"].shape),
            _full_spec(pp["beta"].shape),
            _full_spec(pp["w_out"].shape),
            _full_spec(pp["b_out"].shape),
        ],
        out_specs=pl.BlockSpec((batch_tile, o_pad), lambda i: (i, 0)),  # lane-dense
        compiler_params=pltpu.CompilerParams(
            dimension_semantics=("parallel",),          # shard batch grid over TCs
            vmem_limit_bytes=32 * 1024 * 1024),         # headroom; safe on all gens
    )(x_p, pp["w_in"], pp["b_in"], pp["w_h"], pp["b_h"],
      pp["gamma"], pp["beta"], pp["w_out"], pp["b_out"])

    # Glue (plain JAX): drop padding, cast up, contiguous param-major split.
    y = y[:B, :out_feat].astype(jnp.float32)
    y3 = y.reshape(B, num_params, out_dim)
    return [y3[:, p, :] for p in range(num_params)]


def init_params(key, in_dim, hidden_dim, num_hidden, out_dim, num_params):
    """Deterministic PyTorch-Linear-style init (U(-1/sqrt(fan_in), 1/sqrt(fan_in)))."""
    ks = jax.random.split(key, 3)

    def lin(k, fan_in, fan_out):
        kw, kb = jax.random.split(k)
        bound = 1.0 / jnp.sqrt(fan_in)
        w = jax.random.uniform(kw, (fan_in, fan_out), jnp.float32, -bound, bound)
        b = jax.random.uniform(kb, (1, fan_out), jnp.float32, -bound, bound)
        return w, b

    w_in, b_in = lin(ks[0], in_dim, hidden_dim)

    w_h_list, b_h_list = [], []
    hk = jax.random.split(ks[1], num_hidden)
    for l in range(num_hidden):
        w, b = lin(hk[l], hidden_dim, hidden_dim)
        w_h_list.append(w)
        b_h_list.append(b)
    w_h = jnp.stack(w_h_list, axis=0)                            # (L, H, H)
    b_h = jnp.stack(b_h_list, axis=0)                            # (L, 1, H)

    gamma = jnp.ones((num_hidden, 1, hidden_dim), jnp.float32)   # LayerNorm weight
    beta = jnp.zeros((num_hidden, 1, hidden_dim), jnp.float32)   # LayerNorm bias

    w_out, b_out = lin(ks[2], hidden_dim, out_dim * num_params)

    return dict(w_in=w_in, b_in=b_in, w_h=w_h, b_h=b_h,
                gamma=gamma, beta=beta, w_out=w_out, b_out=b_out)


def theta_reference(x, params, *, num_hidden):
    """Pure-JAX reference (dropout = identity), original (un-permuted) column order,
    matching the kernel's bf16 MXU inputs."""
    bf = jnp.bfloat16
    h = jnp.dot(x.astype(bf), params["w_in"].astype(bf),
                preferred_element_type=jnp.float32) + params["b_in"]
    h = _leaky_relu(h)
    for l in range(num_hidden):
        z = jnp.dot(h.astype(bf), params["w_h"][l].astype(bf),
                    preferred_element_type=jnp.float32) + params["b_h"][l]
        mu = jnp.mean(z, axis=-1, keepdims=True)
        var = jnp.mean((z - mu) ** 2, axis=-1, keepdims=True)
        zn = (z - mu) * jax.lax.rsqrt(var + 1e-5)
        h = _leaky_relu(zn * params["gamma"][l] + params["beta"][l])
    return jnp.dot(h.astype(bf), params["w_out"].astype(bf),
                   preferred_element_type=jnp.float32) + params["b_out"]


if __name__ == "__main__":
    # Small shapes consistent with the module's forward; batch chosen so the
    # auto tile heuristic produces 2 grid steps (both v7x TensorCores busy).
    in_dim, hidden_dim, num_hidden = 4, 32, 2
    out_dim, num_params = 6, 2
    batch = 512

    key = jax.random.PRNGKey(0)
    k_param, k_x = jax.random.split(key)
    params = init_params(k_param, in_dim, hidden_dim, num_hidden, out_dim, num_params)
    x = jax.random.normal(k_x, (batch, in_dim), jnp.float32)

    outs = theta_forward(x, params, num_hidden=num_hidden, hidden_dim=hidden_dim,
                         out_dim=out_dim, num_params=num_params)
    outs = [jax.block_until_ready(o) for o in outs]

    # Correctness check against a pure-JAX reference using the original
    # (interleaved, PyTorch reshape+chunk) column-to-param mapping.
    ref = theta_reference(x, params, num_hidden=num_hidden)
    ref = ref.reshape(batch, out_dim, num_params)
    for i, o in enumerate(outs):
        assert o.shape == (batch, out_dim)
        assert jnp.allclose(o, ref[..., i], atol=2e-2, rtol=2e-2), (
            f"mismatch on param {i}: max abs err "
            f"{jnp.max(jnp.abs(o - ref[..., i]))}")

    print("KERNEL_OK")
</pallas_src>

<mosaic_0001>
module attributes {stable_mosaic.version = 11 : i64} {
  func.func @theta_kernel(%arg0: i32, %arg1: memref<256x4xbf16, #tpu.memory_space<vmem>>, %arg2: memref<4x128xbf16, #tpu.memory_space<vmem>>, %arg3: memref<1x128xf32, #tpu.memory_space<vmem>>, %arg4: memref<2x128x128xbf16, #tpu.memory_space<vmem>>, %arg5: memref<2x1x128xf32, #tpu.memory_space<vmem>>, %arg6: memref<2x1x128xf32, #tpu.memory_space<vmem>>, %arg7: memref<2x1x128xf32, #tpu.memory_space<vmem>>, %arg8: memref<128x128xbf16, #tpu.memory_space<vmem>>, %arg9: memref<1x128xf32, #tpu.memory_space<vmem>>, %arg10: memref<256x128xbf16, #tpu.memory_space<vmem>>) attributes {dimension_semantics = [#tpu.dimension_semantics<parallel>], iteration_bounds = array<i64: 2>, scalar_prefetch = 0 : i64, scratch_operands = 0 : i64, tpu.core_type = #tpu.core_type<tc>, window_params = [{transform_indices = @transform_0, window_bounds = array<i64: 256, 4>}, {pipeline_mode = #tpu.pipeline_mode<synchronous>, transform_indices = @transform_1, window_bounds = array<i64: 4, 128>}, {pipeline_mode = #tpu.pipeline_mode<synchronous>, transform_indices = @transform_2, window_bounds = array<i64: 1, 128>}, {pipeline_mode = #tpu.pipeline_mode<synchronous>, transform_indices = @transform_3, window_bounds = array<i64: 2, 128, 128>}, {pipeline_mode = #tpu.pipeline_mode<synchronous>, transform_indices = @transform_4, window_bounds = array<i64: 2, 1, 128>}, {pipeline_mode = #tpu.pipeline_mode<synchronous>, transform_indices = @transform_5, window_bounds = array<i64: 2, 1, 128>}, {pipeline_mode = #tpu.pipeline_mode<synchronous>, transform_indices = @transform_6, window_bounds = array<i64: 2, 1, 128>}, {pipeline_mode = #tpu.pipeline_mode<synchronous>, transform_indices = @transform_7, window_bounds = array<i64: 128, 128>}, {pipeline_mode = #tpu.pipeline_mode<synchronous>, transform_indices = @transform_8, window_bounds = array<i64: 1, 128>}, {transform_indices = @transform_9, window_bounds = array<i64: 256, 128>}]} {
    %c0 = arith.constant 0 : index
    %c0_0 = arith.constant 0 : index
    %0 = vector.load %arg1[%c0, %c0_0] : memref<256x4xbf16, #tpu.memory_space<vmem>>, vector<256x4xbf16>
    %c0_1 = arith.constant 0 : index
    %c0_2 = arith.constant 0 : index
    %1 = vector.load %arg2[%c0_1, %c0_2] : memref<4x128xbf16, #tpu.memory_space<vmem>>, vector<4x128xbf16>
    %cst = arith.constant dense<0.000000e+00> : vector<256x128xf32>
    %2 = tpu.matmul %0, %1, %cst {dimension_numbers = #tpu.dot_dimension_numbers<[1], [0], [0], [1], [0, 0, 1, 1], [], []>} : vector<256x4xbf16>, vector<4x128xbf16>, vector<256x128xf32> -> vector<256x128xf32>
    %c0_3 = arith.constant 0 : index
    %c0_4 = arith.constant 0 : index
    %3 = vector.load %arg3[%c0_3, %c0_4] : memref<1x128xf32, #tpu.memory_space<vmem>>, vector<1x128xf32>
    %4 = vector.broadcast %3 : vector<1x128xf32> to vector<256x128xf32>
    %5 = arith.addf %2, %4 : vector<256x128xf32>
    %cst_5 = arith.constant 0.000000e+00 : f32
    %6 = vector.broadcast %cst_5 : f32 to vector<256x128xf32>
    %7 = arith.cmpf ogt, %5, %6 : vector<256x128xf32>
    %cst_6 = arith.constant 0.00999999977 : f32
    %8 = vector.broadcast %cst_6 : f32 to vector<256x128xf32>
    %9 = arith.mulf %8, %5 : vector<256x128xf32>
    %10 = arith.select %7, %5, %9 : vector<256x128xi1>, vector<256x128xf32>
    %11 = arith.truncf %10 : vector<256x128xf32> to vector<256x128xbf16>
    %c0_7 = arith.constant 0 : index
    %c0_8 = arith.constant 0 : index
    %c0_9 = arith.constant 0 : index
    %12 = vector.load %arg4[%c0_7, %c0_8, %c0_9] : memref<2x128x128xbf16, #tpu.memory_space<vmem>>, vector<1x128x128xbf16>
    %13 = vector.shape_cast %12 : vector<1x128x128xbf16> to vector<128x128xbf16>
    %cst_10 = arith.constant dense<0.000000e+00> : vector<256x128xf32>
    %14 = tpu.matmul %11, %13, %cst_10 {dimension_numbers = #tpu.dot_dimension_numbers<[1], [0], [0], [1], [0, 0, 1, 1], [], []>} : vector<256x128xbf16>, vector<128x128xbf16>, vector<256x128xf32> -> vector<256x128xf32>
    %c0_11 = arith.constant 0 : index
    %c0_12 = arith.constant 0 : index
    %c0_13 = arith.constant 0 : index
    %15 = vector.load %arg5[%c0_11, %c0_12, %c0_13] : memref<2x1x128xf32, #tpu.memory_space<vmem>>, vector<1x1x128xf32>
    %16 = vector.shape_cast %15 : vector<1x1x128xf32> to vector<1x128xf32>
    %17 = vector.broadcast %16 : vector<1x128xf32> to vector<256x128xf32>
    %18 = arith.addf %14, %17 : vector<256x128xf32>
    %cst_14 = arith.constant dense<0.000000e+00> : vector<256xf32>
    %19 = vector.multi_reduction <add>, %18, %cst_14 [1] : vector<256x128xf32> to vector<256xf32>
    %20 = vector.shape_cast %19 : vector<256xf32> to vector<256x1xf32>
    %21 = arith.mulf %18, %18 : vector<256x128xf32>
    %cst_15 = arith.constant dense<0.000000e+00> : vector<256xf32>
    %22 = vector.multi_reduction <add>, %21, %cst_15 [1] : vector<256x128xf32> to vector<256xf32>
    %23 = vector.shape_cast %22 : vector<256xf32> to vector<256x1xf32>
    %cst_16 = arith.constant 3.125000e-02 : f32
    %24 = vector.broadcast %cst_16 : f32 to vector<256x1xf32>
    %25 = arith.mulf %20, %24 : vector<256x1xf32>
    %cst_17 = arith.constant 3.125000e-02 : f32
    %26 = vector.broadcast %cst_17 : f32 to vector<256x1xf32>
    %27 = arith.mulf %23, %26 : vector<256x1xf32>
    %28 = arith.mulf %25, %25 : vector<256x1xf32>
    %29 = arith.subf %27, %28 : vector<256x1xf32>
    %30 = vector.broadcast %25 : vector<256x1xf32> to vector<256x128xf32>
    %31 = arith.subf %18, %30 : vector<256x128xf32>
    %cst_18 = arith.constant 9.99999974E-6 : f32
    %32 = vector.broadcast %cst_18 : f32 to vector<256x1xf32>
    %33 = arith.addf %29, %32 : vector<256x1xf32>
    %34 = math.rsqrt %33 : vector<256x1xf32>
    %35 = vector.broadcast %34 : vector<256x1xf32> to vector<256x128xf32>
    %36 = arith.mulf %31, %35 : vector<256x128xf32>
    %c0_19 = arith.constant 0 : index
    %c0_20 = arith.constant 0 : index
    %c0_21 = arith.constant 0 : index
    %37 = vector.load %arg6[%c0_19, %c0_20, %c0_21] : memref<2x1x128xf32, #tpu.memory_space<vmem>>, vector<1x1x128xf32>
    %38 = vector.shape_cast %37 : vector<1x1x128xf32> to vector<1x128xf32>
    %39 = vector.broadcast %38 : vector<1x128xf32> to vector<256x128xf32>
    %40 = arith.mulf %36, %39 : vector<256x128xf32>
    %c0_22 = arith.constant 0 : index
    %c0_23 = arith.constant 0 : index
    %c0_24 = arith.constant 0 : index
    %41 = vector.load %arg7[%c0_22, %c0_23, %c0_24] : memref<2x1x128xf32, #tpu.memory_space<vmem>>, vector<1x1x128xf32>
    %42 = vector.shape_cast %41 : vector<1x1x128xf32> to vector<1x128xf32>
    %43 = vector.broadcast %42 : vector<1x128xf32> to vector<256x128xf32>
    %44 = arith.addf %40, %43 : vector<256x128xf32>
    %cst_25 = arith.constant 0.000000e+00 : f32
    %45 = vector.broadcast %cst_25 : f32 to vector<256x128xf32>
    %46 = arith.cmpf ogt, %44, %45 : vector<256x128xf32>
    %cst_26 = arith.constant 0.00999999977 : f32
    %47 = vector.broadcast %cst_26 : f32 to vector<256x128xf32>
    %48 = arith.mulf %47, %44 : vector<256x128xf32>
    %49 = arith.select %46, %44, %48 : vector<256x128xi1>, vector<256x128xf32>
    %50 = arith.truncf %49 : vector<256x128xf32> to vector<256x128xbf16>
    %c1 = arith.constant 1 : index
    %c0_27 = arith.constant 0 : index
    %c0_28 = arith.constant 0 : index
    %51 = vector.load %arg4[%c1, %c0_27, %c0_28] : memref<2x128x128xbf16, #tpu.memory_space<vmem>>, vector<1x128x128xbf16>
    %52 = vector.shape_cast %51 : vector<1x128x128xbf16> to vector<128x128xbf16>
    %cst_29 = arith.constant dense<0.000000e+00> : vector<256x128xf32>
    %53 = tpu.matmul %50, %52, %cst_29 {dimension_numbers = #tpu.dot_dimension_numbers<[1], [0], [0], [1], [0, 0, 1, 1], [], []>} : vector<256x128xbf16>, vector<128x128xbf16>, vector<256x128xf32> -> vector<256x128xf32>
    %c1_30 = arith.constant 1 : index
    %c0_31 = arith.constant 0 : index
    %c0_32 = arith.constant 0 : index
    %54 = vector.load %arg5[%c1_30, %c0_31, %c0_32] : memref<2x1x128xf32, #tpu.memory_space<vmem>>, vector<1x1x128xf32>
    %55 = vector.shape_cast %54 : vector<1x1x128xf32> to vector<1x128xf32>
    %56 = vector.broadcast %55 : vector<1x128xf32> to vector<256x128xf32>
    %57 = arith.addf %53, %56 : vector<256x128xf32>
    %cst_33 = arith.constant dense<0.000000e+00> : vector<256xf32>
    %58 = vector.multi_reduction <add>, %57, %cst_33 [1] : vector<256x128xf32> to vector<256xf32>
    %59 = vector.shape_cast %58 : vector<256xf32> to vector<256x1xf32>
    %60 = arith.mulf %57, %57 : vector<256x128xf32>
    %cst_34 = arith.constant dense<0.000000e+00> : vector<256xf32>
    %61 = vector.multi_reduction <add>, %60, %cst_34 [1] : vector<256x128xf32> to vector<256xf32>
    %62 = vector.shape_cast %61 : vector<256xf32> to vector<256x1xf32>
    %cst_35 = arith.constant 3.125000e-02 : f32
    %63 = vector.broadcast %cst_35 : f32 to vector<256x1xf32>
    %64 = arith.mulf %59, %63 : vector<256x1xf32>
    %cst_36 = arith.constant 3.125000e-02 : f32
    %65 = vector.broadcast %cst_36 : f32 to vector<256x1xf32>
    %66 = arith.mulf %62, %65 : vector<256x1xf32>
    %67 = arith.mulf %64, %64 : vector<256x1xf32>
    %68 = arith.subf %66, %67 : vector<256x1xf32>
    %69 = vector.broadcast %64 : vector<256x1xf32> to vector<256x128xf32>
    %70 = arith.subf %57, %69 : vector<256x128xf32>
    %cst_37 = arith.constant 9.99999974E-6 : f32
    %71 = vector.broadcast %cst_37 : f32 to vector<256x1xf32>
    %72 = arith.addf %68, %71 : vector<256x1xf32>
    %73 = math.rsqrt %72 : vector<256x1xf32>
    %74 = vector.broadcast %73 : vector<256x1xf32> to vector<256x128xf32>
    %75 = arith.mulf %70, %74 : vector<256x128xf32>
    %c1_38 = arith.constant 1 : index
    %c0_39 = arith.constant 0 : index
    %c0_40 = arith.constant 0 : index
    %76 = vector.load %arg6[%c1_38, %c0_39, %c0_40] : memref<2x1x128xf32, #tpu.memory_space<vmem>>, vector<1x1x128xf32>
    %77 = vector.shape_cast %76 : vector<1x1x128xf32> to vector<1x128xf32>
    %78 = vector.broadcast %77 : vector<1x128xf32> to vector<256x128xf32>
    %79 = arith.mulf %75, %78 : vector<256x128xf32>
    %c1_41 = arith.constant 1 : index
    %c0_42 = arith.constant 0 : index
    %c0_43 = arith.constant 0 : index
    %80 = vector.load %arg7[%c1_41, %c0_42, %c0_43] : memref<2x1x128xf32, #tpu.memory_space<vmem>>, vector<1x1x128xf32>
    %81 = vector.shape_cast %80 : vector<1x1x128xf32> to vector<1x128xf32>
    %82 = vector.broadcast %81 : vector<1x128xf32> to vector<256x128xf32>
    %83 = arith.addf %79, %82 : vector<256x128xf32>
    %cst_44 = arith.constant 0.000000e+00 : f32
    %84 = vector.broadcast %cst_44 : f32 to vector<256x128xf32>
    %85 = arith.cmpf ogt, %83, %84 : vector<256x128xf32>
    %cst_45 = arith.constant 0.00999999977 : f32
    %86 = vector.broadcast %cst_45 : f32 to vector<256x128xf32>
    %87 = arith.mulf %86, %83 : vector<256x128xf32>
    %88 = arith.select %85, %83, %87 : vector<256x128xi1>, vector<256x128xf32>
    %89 = arith.truncf %88 : vector<256x128xf32> to vector<256x128xbf16>
    %c0_46 = arith.constant 0 : index
    %c0_47 = arith.constant 0 : index
    %90 = vector.load %arg8[%c0_46, %c0_47] : memref<128x128xbf16, #tpu.memory_space<vmem>>, vector<128x128xbf16>
    %cst_48 = arith.constant dense<0.000000e+00> : vector<256x128xf32>
    %91 = tpu.matmul %89, %90, %cst_48 {dimension_numbers = #tpu.dot_dimension_numbers<[1], [0], [0], [1], [0, 0, 1, 1], [], []>} : vector<256x128xbf16>, vector<128x128xbf16>, vector<256x128xf32> -> vector<256x128xf32>
    %c0_49 = arith.constant 0 : index
    %c0_50 = arith.constant 0 : index
    %92 = vector.load %arg9[%c0_49, %c0_50] : memref<1x128xf32, #tpu.memory_space<vmem>>, vector<1x128xf32>
    %93 = vector.broadcast %92 : vector<1x128xf32> to vector<256x128xf32>
    %94 = arith.addf %91, %93 : vector<256x128xf32>
    %95 = arith.truncf %94 : vector<256x128xf32> to vector<256x128xbf16>
    %c0_51 = arith.constant 0 : index
    %c0_52 = arith.constant 0 : index
    %96 = vector.load %arg10[%c0_51, %c0_52] : memref<256x128xbf16, #tpu.memory_space<vmem>>, vector<256x128xbf16>
    tpu.vector_store %arg10[%c0_51, %c0_52], %95 {strides = array<i32>} : memref<256x128xbf16, #tpu.memory_space<vmem>>, vector<256x128xbf16>,
    return
  }
  func.func @transform_0(%arg0: i32) -> (i32, i32) {
    %c0_i32 = arith.constant 0 : i32
    %c0_i32_0 = arith.constant 0 : i32
    return %arg0, %c0_i32 : i32, i32
  }
  func.func @transform_1(%arg0: i32) -> (i32, i32) {
    %c0_i32 = arith.constant 0 : i32
    %c0_i32_0 = arith.constant 0 : i32
    %c0_i32_1 = arith.constant 0 : i32
    return %c0_i32, %c0_i32_0 : i32, i32
  }
  func.func @transform_2(%arg0: i32) -> (i32, i32) {
    %c0_i32 = arith.constant 0 : i32
    %c0_i32_0 = arith.constant 0 : i32
    %c0_i32_1 = arith.constant 0 : i32
    return %c0_i32, %c0_i32_0 : i32, i32
  }
  func.func @transform_3(%arg0: i32) -> (i32, i32, i32) {
    %c0_i32 = arith.constant 0 : i32
    %c0_i32_0 = arith.constant 0 : i32
    %c0_i32_1 = arith.constant 0 : i32
    %c0_i32_2 = arith.constant 0 : i32
    return %c0_i32, %c0_i32_0, %c0_i32_1 : i32, i32, i32
  }
  func.func @transform_4(%arg0: i32) -> (i32, i32, i32) {
    %c0_i32 = arith.constant 0 : i32
    %c0_i32_0 = arith.constant 0 : i32
    %c0_i32_1 = arith.constant 0 : i32
    %c0_i32_2 = arith.constant 0 : i32
    return %c0_i32, %c0_i32_0, %c0_i32_1 : i32, i32, i32
  }
  func.func @transform_5(%arg0: i32) -> (i32, i32, i32) {
    %c0_i32 = arith.constant 0 : i32
    %c0_i32_0 = arith.constant 0 : i32
    %c0_i32_1 = arith.constant 0 : i32
    %c0_i32_2 = arith.constant 0 : i32
    return %c0_i32, %c0_i32_0, %c0_i32_1 : i32, i32, i32
  }
  func.func @transform_6(%arg0: i32) -> (i32, i32, i32) {
    %c0_i32 = arith.constant 0 : i32
    %c0_i32_0 = arith.constant 0 : i32
    %c0_i32_1 = arith.constant 0 : i32
    %c0_i32_2 = arith.constant 0 : i32
    return %c0_i32, %c0_i32_0, %c0_i32_1 : i32, i32, i32
  }
  func.func @transform_7(%arg0: i32) -> (i32, i32) {
    %c0_i32 = arith.constant 0 : i32
    %c0_i32_0 = arith.constant 0 : i32
    %c0_i32_1 = arith.constant 0 : i32
    return %c0_i32, %c0_i32_0 : i32, i32
  }
  func.func @transform_8(%arg0: i32) -> (i32, i32) {
    %c0_i32 = arith.constant 0 : i32
    %c0_i32_0 = arith.constant 0 : i32
    %c0_i32_1 = arith.constant 0 : i32
    return %c0_i32, %c0_i32_0 : i32, i32
  }
  func.func @transform_9(%arg0: i32) -> (i32, i32) {
    %c0_i32 = arith.constant 0 : i32
    %c0_i32_0 = arith.constant 0 : i32
    return %arg0, %c0_i32 : i32, i32
  }
}

</mosaic_0001>

<llo_original>
// kernel: tpu_custom_call.1
$region0: #{tpu_custom_call.1}
  #allocation0 [shape = 'u32[]', space=smem, size = 0x4, offset = 0x4, fixed_abs, tag = 'smem constant byte address 0x4 - core index']
  #allocation1 [shape = 'u32[144,128]{1,0:T(1,128)}', space=vmem, size = 0x12000, scoped, tag = 'internal scratch']
  %s0 = inlined_call_operand.vmem [shape: bf16[512,4], index: 0, kind: input, shape index: {}]
  %s1 = inlined_call_operand.vmem [shape: bf16[4,128], index: 1, kind: input, shape index: {}]
  %s2 = inlined_call_operand.vmem [shape: f32[1,128], index: 2, kind: input, shape index: {}]
  %s3 = inlined_call_operand.vmem [shape: bf16[2,128,128], index: 3, kind: input, shape index: {}]
  %s4 = inlined_call_operand.vmem [shape: f32[2,1,128], index: 4, kind: input, shape index: {}]
  %s5 = inlined_call_operand.vmem [shape: f32[2,1,128], index: 5, kind: input, shape index: {}]
  %s6 = inlined_call_operand.vmem [shape: f32[2,1,128], index: 6, kind: input, shape index: {}]
  %s7 = inlined_call_operand.vmem [shape: bf16[128,128], index: 7, kind: input, shape index: {}]
  %s8 = inlined_call_operand.vmem [shape: f32[1,128], index: 8, kind: input, shape index: {}]
  %s9 = inlined_call_operand.hbm [shape: bf16[512,128], index: 9, kind: output, shape index: {}]
  %s10 = sld [smem:[#allocation0]]
  $region69: #{tpu_custom_call.1} parent=0
    _
  %s12 = ssub.s32 1, %s10
  %s13 = scalar_select 0, %s12, %s10
  $region1: #{tpu_custom_call.1} parent=0
    #allocation2 [shape = 'u8[131072]{0}', space=vmem, size = 0x20000, scoped, tag = 'output window, operand 0']
    #allocation3 [shape = 's32[2]{0}', space=sflag, size = 0x8, scoped, tag = 'scoped memory for tpu_custom_call.1']
    %14 = vsyncpa [#allocation3], 0
    %s15 = scalar_lea.sflag [#allocation3], 1
    %16 = vsyncpa %s15, 0
    loop: start=0, step=1, limit=4
    $region2: #{tpu_custom_call.1} parent=1 // loop_pre_header
      _
    $region3: #{tpu_custom_call.1} parent=1 // loop_header
      %s18 = sphi 0, %s22
      %p19 = scmp.ge.s32.totalorder %s18, 4
      %s28 = sphi 0, %s30
      %s31 = sphi 0, %s28
      %s32 = sphi 0, %s31
      %s48 = sphi 0, %s32
      %s52 = sphi 0, %s52
      %s54 = sphi 0, %s52
      %s55 = sphi 0, %s54
      %s69 = sphi 0, %s55
      %s73 = sphi 0, %s73
      %s75 = sphi 0, %s73
      %s76 = sphi 0, %s75
      %s90 = sphi 0, %s76
      %s94 = sphi 0, %s94
      %s96 = sphi 0, %s94
      %s97 = sphi 0, %s96
      %s111 = sphi 0, %s97
      %s115 = sphi 0, %s115
      %s117 = sphi 0, %s115
      %s118 = sphi 0, %s117
      %s132 = sphi 0, %s118
      %s136 = sphi 0, %s136
      %s138 = sphi 0, %s136
      %s139 = sphi 0, %s138
      %s153 = sphi 0, %s139
      %s157 = sphi 0, %s157
      %s159 = sphi 0, %s157
      %s160 = sphi 0, %s159
      %s174 = sphi 0, %s160
      %s178 = sphi 0, %s178
      %s180 = sphi 0, %s178
      %s181 = sphi 0, %s180
      %s195 = sphi 0, %s181
      %s199 = sphi 0, %s199
      %s201 = sphi 0, %s199
      %s202 = sphi 0, %s201
      %s216 = sphi 0, %s202
      %s222 = sphi 0, %s224
      %s225 = sphi 0, %s222
      %s226 = sphi 0, %s225
      %s242 = sphi 0, %s226
    $region4: #{tpu_custom_call.1} parent=1 // loop_header_branch
      %21 = sbr.rel (%p19) target = $region8
    $region5: #{tpu_custom_call.1} parent=1 // loop_body
      %s23 = ssub.s32 %s18, 1
      %s24 = ssub.s32 %s18, 2
      %s25 = sadd.s32 %s18, 1
      %s26 = ssub.s32 %s18, %s25
      %p27 = scmp.eq.s32.totalorder %s26, 0
      %s29 = sadd.s32 %s28, 1
      %s30 = scalar_select %p27, %s28, %s29
      %p33 = pneg %p27
      %p34 = scmp.eq.s32.totalorder %s18, 1
      %p35 = por %p33, %p34
      %p36 = scmp.ne.s32.totalorder %s28, %s31
      %p37 = scmp.eq.s32.totalorder %s18, 0
      %p38 = por %p36, %p37
      %p39 = scmp.ne.s32.totalorder %s28, %s31
      %p40 = scmp.eq.s32.totalorder %s23, 1
      %p41 = por %p39, %p40
      %p42 = scmp.ne.s32.totalorder %s31, %s32
      %p43 = scmp.eq.s32.totalorder %s23, 0
      %p44 = por %p42, %p43
      %p45 = scmp.ne.s32.totalorder %s31, %s32
      %p46 = scmp.eq.s32.totalorder %s24, 1
      %p47 = por %p45, %p46
      %p49 = scmp.ne.s32.totalorder %s32, %s48
      %p50 = scmp.eq.s32.totalorder %s24, 0
      %p51 = por %p49, %p50
      %s53 = sadd.s32 %s52, 1
      %p56 = scmp.eq.s32.totalorder %s18, 1
      %p57 = scmp.ne.s32.totalorder %s52, %s54
      %p58 = scmp.eq.s32.totalorder %s18, 0
      %p59 = por %p57, %p58
      %p60 = scmp.ne.s32.totalorder %s52, %s54
      %p61 = scmp.eq.s32.totalorder %s23, 1
      %p62 = por %p60, %p61
      %p63 = scmp.ne.s32.totalorder %s54, %s55
      %p64 = scmp.eq.s32.totalorder %s23, 0
      %p65 = por %p63, %p64
      %p66 = scmp.ne.s32.totalorder %s54, %s55
      %p67 = scmp.eq.s32.totalorder %s24, 1
      %p68 = por %p66, %p67
      %p70 = scmp.ne.s32.totalorder %s55, %s69
      %p71 = scmp.eq.s32.totalorder %s24, 0
      %p72 = por %p70, %p71
      %s74 = sadd.s32 %s73, 1
      %p77 = scmp.eq.s32.totalorder %s18, 1
      %p78 = scmp.ne.s32.totalorder %s73, %s75
      %p79 = scmp.eq.s32.totalorder %s18, 0
      %p80 = por %p78, %p79
      %p81 = scmp.ne.s32.totalorder %s73, %s75
      %p82 = scmp.eq.s32.totalorder %s23, 1
      %p83 = por %p81, %p82
      %p84 = scmp.ne.s32.totalorder %s75, %s76
      %p85 = scmp.eq.s32.totalorder %s23, 0
      %p86 = por %p84, %p85
      %p87 = scmp.ne.s32.totalorder %s75, %s76
      %p88 = scmp.eq.s32.totalorder %s24, 1
      %p89 = por %p87, %p88
      %p91 = scmp.ne.s32.totalorder %s76, %s90
      %p92 = scmp.eq.s32.totalorder %s24, 0
      %p93 = por %p91, %p92
      %s95 = sadd.s32 %s94, 1
      %p98 = scmp.eq.s32.totalorder %s18, 1
      %p99 = scmp.ne.s32.totalorder %s94, %s96
      %p100 = scmp.eq.s32.totalorder %s18, 0
      %p101 = por %p99, %p100
      %p102 = scmp.ne.s32.totalorder %s94, %s96
      %p103 = scmp.eq.s32.totalorder %s23, 1
      %p104 = por %p102, %p103
      %p105 = scmp.ne.s32.totalorder %s96, %s97
      %p106 = scmp.eq.s32.totalorder %s23, 0
      %p107 = por %p105, %p106
      %p108 = scmp.ne.s32.totalorder %s96, %s97
      %p109 = scmp.eq.s32.totalorder %s24, 1
      %p110 = por %p108, %p109
      %p112 = scmp.ne.s32.totalorder %s97, %s111
      %p113 = scmp.eq.s32.totalorder %s24, 0
      %p114 = por %p112, %p113
      %s116 = sadd.s32 %s115, 1
      %p119 = scmp.eq.s32.totalorder %s18, 1
      %p120 = scmp.ne.s32.totalorder %s115, %s117
      %p121 = scmp.eq.s32.totalorder %s18, 0
      %p122 = por %p120, %p121
      %p123 = scmp.ne.s32.totalorder %s115, %s117
      %p124 = scmp.eq.s32.totalorder %s23, 1
      %p125 = por %p123, %p124
      %p126 = scmp.ne.s32.totalorder %s117, %s118
      %p127 = scmp.eq.s32.totalorder %s23, 0
      %p128 = por %p126, %p127
      %p129 = scmp.ne.s32.totalorder %s117, %s118
      %p130 = scmp.eq.s32.totalorder %s24, 1
      %p131 = por %p129, %p130
      %p133 = scmp.ne.s32.totalorder %s118, %s132
      %p134 = scmp.eq.s32.totalorder %s24, 0
      %p135 = por %p133, %p134
      %s137 = sadd.s32 %s136, 1
      %p140 = scmp.eq.s32.totalorder %s18, 1
      %p141 = scmp.ne.s32.totalorder %s136, %s138
      %p142 = scmp.eq.s32.totalorder %s18, 0
      %p143 = por %p141, %p142
      %p144 = scmp.ne.s32.totalorder %s136, %s138
      %p145 = scmp.eq.s32.totalorder %s23, 1
      %p146 = por %p144, %p145
      %p147 = scmp.ne.s32.totalorder %s138, %s139
      %p148 = scmp.eq.s32.totalorder %s23, 0
      %p149 = por %p147, %p148
      %p150 = scmp.ne.s32.totalorder %s138, %s139
      %p151 = scmp.eq.s32.totalorder %s24, 1
      %p152 = por %p150, %p151
      %p154 = scmp.ne.s32.totalorder %s139, %s153
      %p155 = scmp.eq.s32.totalorder %s24, 0
      %p156 = por %p154, %p155
      %s158 = sadd.s32 %s157, 1
      %p161 = scmp.eq.s32.totalorder %s18, 1
      %p162 = scmp.ne.s32.totalorder %s157, %s159
      %p163 = scmp.eq.s32.totalorder %s18, 0
      %p164 = por %p162, %p163
      %p165 = scmp.ne.s32.totalorder %s157, %s159
      %p166 = scmp.eq.s32.totalorder %s23, 1
      %p167 = por %p165, %p166
      %p168 = scmp.ne.s32.totalorder %s159, %s160
      %p169 = scmp.eq.s32.totalorder %s23, 0
      %p170 = por %p168, %p169
      %p171 = scmp.ne.s32.totalorder %s159, %s160
      %p172 = scmp.eq.s32.totalorder %s24, 1
      %p173 = por %p171, %p172
      %p175 = scmp.ne.s32.totalorder %s160, %s174
      %p176 = scmp.eq.s32.totalorder %s24, 0
      %p177 = por %p175, %p176
      %s179 = sadd.s32 %s178, 1
      %p182 = scmp.eq.s32.totalorder %s18, 1
      %p183 = scmp.ne.s32.totalorder %s178, %s180
      %p184 = scmp.eq.s32.totalorder %s18, 0
      %p185 = por %p183, %p184
      %p186 = scmp.ne.s32.totalorder %s178, %s180
      %p187 = scmp.eq.s32.totalorder %s23, 1
      %p188 = por %p186, %p187
      %p189 = scmp.ne.s32.totalorder %s180, %s181
      %p190 = scmp.eq.s32.totalorder %s23, 0
      %p191 = por %p189, %p190
      %p192 = scmp.ne.s32.totalorder %s180, %s181
      %p193 = scmp.eq.s32.totalorder %s24, 1
      %p194 = por %p192, %p193
      %p196 = scmp.ne.s32.totalorder %s181, %s195
      %p197 = scmp.eq.s32.totalorder %s24, 0
      %p198 = por %p196, %p197
      %s200 = sadd.s32 %s199, 1
      %p203 = scmp.eq.s32.totalorder %s18, 1
      %p204 = scmp.ne.s32.totalorder %s199, %s201
      %p205 = scmp.eq.s32.totalorder %s18, 0
      %p206 = por %p204, %p205
      %p207 = scmp.ne.s32.totalorder %s199, %s201
      %p208 = scmp.eq.s32.totalorder %s23, 1
      %p209 = por %p207, %p208
      %p210 = scmp.ne.s32.totalorder %s201, %s202
      %p211 = scmp.eq.s32.totalorder %s23, 0
      %p212 = por %p210, %p211
      %p213 = scmp.ne.s32.totalorder %s201, %s202
      %p214 = scmp.eq.s32.totalorder %s24, 1
      %p215 = por %p213, %p214
      %p217 = scmp.ne.s32.totalorder %s202, %s216
      %p218 = scmp.eq.s32.totalorder %s24, 0
      %p219 = por %p217, %p218
      %s220 = ssub.s32 %s18, %s25
      %p221 = scmp.eq.s32.totalorder %s220, 0
      %s223 = sadd.s32 %s222, 1
      %s224 = scalar_select %p221, %s222, %s223
      %p227 = pneg %p221
      %p228 = scmp.eq.s32.totalorder %s18, 1
      %p229 = por %p227, %p228
      %p230 = scmp.ne.s32.totalorder %s222, %s225
      %p231 = scmp.eq.s32.totalorder %s18, 0
      %p232 = por %p230, %p231
      %p233 = scmp.ne.s32.totalorder %s222, %s225
      %p234 = scmp.eq.s32.totalorder %s23, 1
      %p235 = por %p233, %p234
      %p236 = scmp.ne.s32.totalorder %s225, %s226
      %p237 = scmp.eq.s32.totalorder %s23, 0
      %p238 = por %p236, %p237
      %p239 = scmp.ne.s32.totalorder %s225, %s226
      %p240 = scmp.eq.s32.totalorder %s24, 1
      %p241 = por %p239, %p240
      %p243 = scmp.ne.s32.totalorder %s226, %s242
      %p244 = scmp.eq.s32.totalorder %s24, 0
      %p245 = por %p243, %p244
      %p246 = scmp.le.s32.totalorder 1, %s18
      %p247 = scmp.lt.s32.totalorder %s18, 3
      %p248 = pnand %p246, %p247
      %p249 = pneg %p248
      // Predicated region
      $region9: #{tpu_custom_call.1} parent=5 // pred_check
        _
      $region10: #{tpu_custom_call.1} parent=5 // pred_check_branch
        %251 = sbr.rel (%p248) target = $region12
      $region11: #{tpu_custom_call.1} parent=5 // pred_region
        %s252 = ssub.s32 %s18, 1
        // Predicated region
        $region13: #{tpu_custom_call.1} parent=11 // pred_check
          %p253 = pneg %p65
        $region14: #{tpu_custom_call.1} parent=11 // pred_check_branch
          %255 = sbr.rel (%p253) target = $region16
        $region15: #{tpu_custom_call.1} parent=11 // pred_region
          _
        $region16: #{tpu_custom_call.1} parent=11 // pred_fallthru
          _
        // Predicated region
        $region17: #{tpu_custom_call.1} parent=11 // pred_check
          %p256 = pneg %p86
        $region18: #{tpu_custom_call.1} parent=11 // pred_check_branch
          %258 = sbr.rel (%p256) target = $region20
        $region19: #{tpu_custom_call.1} parent=11 // pred_region
          _
        $region20: #{tpu_custom_call.1} parent=11 // pred_fallthru
          _
        // Predicated region
        $region21: #{tpu_custom_call.1} parent=11 // pred_check
          %p259 = pneg %p107
        $region22: #{tpu_custom_call.1} parent=11 // pred_check_branch
          %261 = sbr.rel (%p259) target = $region24
        $region23: #{tpu_custom_call.1} parent=11 // pred_region
          _
        $region24: #{tpu_custom_call.1} parent=11 // pred_fallthru
          _
        // Predicated region
        $region25: #{tpu_custom_call.1} parent=11 // pred_check
          %p262 = pneg %p128
        $region26: #{tpu_custom_call.1} parent=11 // pred_check_branch
          %264 = sbr.rel (%p262) target = $region28
        $region27: #{tpu_custom_call.1} parent=11 // pred_region
          _
        $region28: #{tpu_custom_call.1} parent=11 // pred_fallthru
          _
        // Predicated region
        $region29: #{tpu_custom_call.1} parent=11 // pred_check
          %p265 = pneg %p149
        $region30: #{tpu_custom_call.1} parent=11 // pred_check_branch
          %267 = sbr.rel (%p265) target = $region32
        $region31: #{tpu_custom_call.1} parent=11 // pred_region
          _
        $region32: #{tpu_custom_call.1} parent=11 // pred_fallthru
          _
        // Predicated region
        $region33: #{tpu_custom_call.1} parent=11 // pred_check
          %p268 = pneg %p170
        $region34: #{tpu_custom_call.1} parent=11 // pred_check_branch
          %270 = sbr.rel (%p268) target = $region36
        $region35: #{tpu_custom_call.1} parent=11 // pred_region
          _
        $region36: #{tpu_custom_call.1} parent=11 // pred_fallthru
          _
        // Predicated region
        $region37: #{tpu_custom_call.1} parent=11 // pred_check
          %p271 = pneg %p191
        $region38: #{tpu_custom_call.1} parent=11 // pred_check_branch
          %273 = sbr.rel (%p271) target = $region40
        $region39: #{tpu_custom_call.1} parent=11 // pred_region
          _
        $region40: #{tpu_custom_call.1} parent=11 // pred_fallthru
          _
        // Predicated region
        $region41: #{tpu_custom_call.1} parent=11 // pred_check
          %p274 = pneg %p212
        $region42: #{tpu_custom_call.1} parent=11 // pred_check_branch
          %276 = sbr.rel (%p274) target = $region44
        $region43: #{tpu_custom_call.1} parent=11 // pred_region
          _
        $region44: #{tpu_custom_call.1} parent=11 // pred_fallthru
          _
      $region12: #{tpu_custom_call.1} parent=5 // pred_fallthru
        _
      %p277 = scmp.lt.s32.totalorder %s18, 2
      // Predicated region
      $region45: #{tpu_custom_call.1} parent=5 // pred_check
        %p278 = pneg %p277
      $region46: #{tpu_custom_call.1} parent=5 // pred_check_branch
        %280 = sbr.rel (%p278) target = $region48
      $region47: #{tpu_custom_call.1} parent=5 // pred_region
        // Predicated region
        $region49: #{tpu_custom_call.1} parent=47 // pred_check
          %p281 = pneg %p38
        $region50: #{tpu_custom_call.1} parent=47 // pred_check_branch
          %283 = sbr.rel (%p281) target = $region52
        $region51: #{tpu_custom_call.1} parent=47 // pred_region
          %s284 = smul.u32 32, %s18
          %p285 = scmp.lt.s32.totalorder %s284, 63
          %s286 = scalar_select %p285, %s284, 63
          %s287 = smul.addr %s286, 4
          %s288 = scalar_lea.vmem %s0, %s287
          %s289 = smul.u32 32, %s18
        $region52: #{tpu_custom_call.1} parent=47 // pred_fallthru
          _
      $region48: #{tpu_custom_call.1} parent=5 // pred_fallthru
        _
      %p290 = scmp.le.s32.totalorder 1, %s18
      %p291 = scmp.lt.s32.totalorder %s18, 3
      %p292 = pnand %p290, %p291
      %p293 = pneg %p292
      // Predicated region
      $region53: #{tpu_custom_call.1} parent=5 // pred_check
        _
      $region54: #{tpu_custom_call.1} parent=5 // pred_check_branch
        %295 = sbr.rel (%p292) target = $region56
      $region55: #{tpu_custom_call.1} parent=5 // pred_region
        %s296 = ssub.s32 %s18, 1
        %s297 = smul.u32 32, %s23
        %p298 = scmp.lt.s32.totalorder %s297, 63
        %s299 = scalar_select %p298, %s297, 63
        %s300 = smul.addr %s299, 4
        %s301 = scalar_lea.vmem %s0, %s300
        %p302 = pneg %p44
        %p303 = pneg %p41
        %p304 = pneg %p65
        %p305 = pneg %p62
        %p306 = pneg %p86
        %p307 = pneg %p83
        %p308 = pneg %p107
        %p309 = pneg %p104
        %p310 = pneg %p128
        %p311 = pneg %p125
        %p312 = pneg %p149
        %p313 = pneg %p146
        %p314 = pneg %p170
        %p315 = pneg %p167
        %p316 = pneg %p191
        %p317 = pneg %p188
        %p318 = pneg %p212
        %p319 = pneg %p209
        %p320 = pneg %p238
        %p321 = pneg %p235
        %s322 = sand.u32 %s225, 1
        %s323 = scalar_lea.sflag [#allocation3], %s322
        %s324 = sand.u32 %s225, 1
        %s325 = smul.addr %s324, 128
        %s326 = scalar_lea.vmem [#allocation2], %s325
        %s327 = smul.u32 32, %s23
        %p328 = scmp.lt.s32.totalorder %s327, 63
        %s329 = scalar_select %p328, %s327, 63
        %s330 = smul.addr %s329, 4
        %s331 = scalar_lea.vmem %s0, %s330
        %s332 = smul.u32 32, %s23
        %s333 = smul.u32 32, %s23
        %v335 = vld [vmem:[%s331] sm:$0xf]
        %v336 = vld [vmem:[%s331 + $0x4] sm:$0xf]
        %v337 = vld [vmem:[%s331 + $0x8] sm:$0xf]
        %v338 = vld [vmem:[%s331 + $0xc] sm:$0xf]
        %v339 = vld [vmem:[%s331 + $0x10] sm:$0xf]
        %v340 = vld [vmem:[%s331 + $0x14] sm:$0xf]
        %v341 = vld [vmem:[%s331 + $0x18] sm:$0xf]
        %v342 = vld [vmem:[%s331 + $0x1c] sm:$0xf]
        %v343 = vld [vmem:[%s331 + $0x20] sm:$0xf]
        %v344 = vld [vmem:[%s331 + $0x24] sm:$0xf]
        %v345 = vld [vmem:[%s331 + $0x28] sm:$0xf]
        %v346 = vld [vmem:[%s331 + $0x2c] sm:$0xf]
        %v347 = vld [vmem:[%s331 + $0x30] sm:$0xf]
        %v348 = vld [vmem:[%s331 + $0x34] sm:$0xf]
        %v349 = vld [vmem:[%s331 + $0x38] sm:$0xf]
        %v350 = vld [vmem:[%s331 + $0x3c] sm:$0xf]
        %v351 = vld [vmem:[%s331 + $0x40] sm:$0xf]
        %v352 = vld [vmem:[%s331 + $0x44] sm:$0xf]
        %v353 = vld [vmem:[%s331 + $0x48] sm:$0xf]
        %v354 = vld [vmem:[%s331 + $0x4c] sm:$0xf]
        %v355 = vld [vmem:[%s331 + $0x50] sm:$0xf]
        %v356 = vld [vmem:[%s331 + $0x54] sm:$0xf]
        %v357 = vld [vmem:[%s331 + $0x58] sm:$0xf]
        %v358 = vld [vmem:[%s331 + $0x5c] sm:$0xf]
        %v359 = vld [vmem:[%s331 + $0x60] sm:$0xf]
        %v360 = vld [vmem:[%s331 + $0x64] sm:$0xf]
        %v361 = vld [vmem:[%s331 + $0x68] sm:$0xf]
        %v362 = vld [vmem:[%s331 + $0x6c] sm:$0xf]
        %v363 = vld [vmem:[%s331 + $0x70] sm:$0xf]
        %v364 = vld [vmem:[%s331 + $0x74] sm:$0xf]
        %v365 = vld [vmem:[%s331 + $0x78] sm:$0xf]
        %v366 = vld [vmem:[%s331 + $0x7c] sm:$0xf]
        %v367 = vld [vmem:[%s1] sm:$0x3]
        %v368 = vld [vmem:[%s2] sm:$0x1]
        %v370 = vlaneseq
        %v371 = vshrl.u32 %v370, 7
        %v372 = vsub.s32 0, %v371
        %v373 = vrot.slane %v368, %v372
        %v407 = vunpack.c.l.b16 %v335
        %v408 = vunpack.c.l.b16 %v336
        %v409 = vunpack.c.l.b16 %v337
        %v410 = vunpack.c.l.b16 %v338
        %v411 = vunpack.c.l.b16 %v339
        %v412 = vunpack.c.l.b16 %v340
        %v413 = vunpack.c.l.b16 %v341
        %v414 = vunpack.c.l.b16 %v342
        %v415 = vunpack.c.l.b16 %v343
        %v416 = vunpack.c.l.b16 %v344
        %v417 = vunpack.c.l.b16 %v345
        %v418 = vunpack.c.l.b16 %v346
        %v419 = vunpack.c.l.b16 %v347
        %v420 = vunpack.c.l.b16 %v348
        %v421 = vunpack.c.l.b16 %v349
        %v422 = vunpack.c.l.b16 %v350
        %v423 = vunpack.c.l.b16 %v351
        %v424 = vunpack.c.l.b16 %v352
        %v425 = vunpack.c.l.b16 %v353
        %v426 = vunpack.c.l.b16 %v354
        %v427 = vunpack.c.l.b16 %v355
        %v428 = vunpack.c.l.b16 %v356
        %v429 = vunpack.c.l.b16 %v357
        %v430 = vunpack.c.l.b16 %v358
        %v431 = vunpack.c.l.b16 %v359
        %v432 = vunpack.c.l.b16 %v360
        %v433 = vunpack.c.l.b16 %v361
        %v434 = vunpack.c.l.b16 %v362
        %v435 = vunpack.c.l.b16 %v363
        %v436 = vunpack.c.l.b16 %v364
        %v437 = vunpack.c.l.b16 %v365
        %v438 = vunpack.c.l.b16 %v366
        %v439 = vpack.c.b16 %v408, %v407
        %v440 = vpack.c.b16 %v410, %v409
        %v441 = vpack.c.b16 %v412, %v411
        %v442 = vpack.c.b16 %v414, %v413
        %v443 = vpack.c.b16 %v416, %v415
        %v444 = vpack.c.b16 %v418, %v417
        %v445 = vpack.c.b16 %v420, %v419
        %v446 = vpack.c.b16 %v422, %v421
        %v447 = vpack.c.b16 %v424, %v423
        %v448 = vpack.c.b16 %v426, %v425
        %v449 = vpack.c.b16 %v428, %v427
        %v450 = vpack.c.b16 %v430, %v429
        %v451 = vpack.c.b16 %v432, %v431
        %v452 = vpack.c.b16 %v434, %v433
        %v453 = vpack.c.b16 %v436, %v435
        %v454 = vpack.c.b16 %v438, %v437
        %vm455 = vcmask 31744
        %v457 = vsel %vm455, %v439, 0
        %v460 = vsel %vm455, %v440, 0
        %v463 = vsel %vm455, %v441, 0
        %v466 = vsel %vm455, %v442, 0
        %v469 = vsel %vm455, %v443, 0
        %v472 = vsel %vm455, %v444, 0
        %v475 = vsel %vm455, %v445, 0
        %v478 = vsel %vm455, %v446, 0
        %v481 = vsel %vm455, %v447, 0
        %v484 = vsel %vm455, %v448, 0
        %v487 = vsel %vm455, %v449, 0
        %v490 = vsel %vm455, %v450, 0
        %v493 = vsel %vm455, %v451, 0
        %v496 = vsel %vm455, %v452, 0
        %v499 = vsel %vm455, %v453, 0
        %v502 = vsel %vm455, %v454, 0
        %vm504 = vcmask 1041408
        %v506 = vsel %vm504, %v367, 0
        %508 = vmatprep.subr.bf16.mxu0 0
        %509 = vmatpush1.bf16.msra.mxu0 %v506
        %510 = vmatprep.subr.bf16.mxu0 0
        %511 = vmatpush1.bf16.msra.mxu0 0
        %512 = vmatprep.subr.bf16.mxu0 0
        %513 = vmatpush1.bf16.msra.mxu0 0
        %514 = vmatprep.subr.bf16.mxu0 0
        %515 = vmatpush1.bf16.msra.mxu0 0
        %516 = vmatprep.subr.bf16.mxu0 0
        %517 = vmatpush1.bf16.msra.mxu0 0
        %518 = vmatprep.subr.bf16.mxu0 0
        %519 = vmatpush1.bf16.msra.mxu0 0
        %520 = vmatprep.subr.bf16.mxu0 0
        %521 = vmatpush1.bf16.msra.mxu0 0
        %522 = vmatprep.subr.bf16.mxu0 0
        %523 = vmatpush1.bf16.msra.mxu0 0
        %524 = vmatprep.subr.bf16.mxu0 0
        %525 = vmatpush1.bf16.msra.mxu0 0
        %526 = vmatprep.subr.bf16.mxu0 0
        %527 = vmatpush1.bf16.msra.mxu0 0
        %528 = vmatprep.subr.bf16.mxu0 0
        %529 = vmatpush1.bf16.msra.mxu0 0
        %530 = vmatprep.subr.bf16.mxu0 0
        %531 = vmatpush1.bf16.msra.mxu0 0
        %532 = vmatprep.subr.bf16.mxu0 0
        %533 = vmatpush1.bf16.msra.mxu0 0
        %534 = vmatprep.subr.bf16.mxu0 0
        %535 = vmatpush1.bf16.msra.mxu0 0
        %536 = vmatprep.subr.bf16.mxu0 0
        %537 = vmatpush1.bf16.msra.mxu0 0
        %538 = vmatprep.subr.bf16.mxu0 0
        %539 = vmatpush1.bf16.msra.mxu0 0
        %540 = vmatprep.mubr.bf16.mxu0 0
        %541 = vmatmul.mubr.bf16.gmra.mrb[0].mxu0 %v457
        %v542 = vpop.f32.mrb[0].mxu0
        %v543 = vadd.f32 %v373, %v542
        %v544 = vpop.f32.mrb[0].mxu0
        %v545 = vpop.f32.mrb[0].mxu0
        %v546 = vadd.f32 %v373, %v545
        %v547 = vpop.f32.mrb[0].mxu0
        %548 = vmatprep.mubr.bf16.mxu0 0
        %549 = vmatmul.mubr.bf16.gmra.mrb[0].mxu0 %v460
        %v550 = vpop.f32.mrb[0].mxu0
        %v551 = vadd.f32 %v373, %v550
        %v552 = vpop.f32.mrb[0].mxu0
        %v553 = vpop.f32.mrb[0].mxu0
        %v554 = vadd.f32 %v373, %v553
        %v555 = vpop.f32.mrb[0].mxu0
        %556 = vmatprep.mubr.bf16.mxu0 0
        %557 = vmatmul.mubr.bf16.gmra.mrb[0].mxu0 %v463
        %v558 = vpop.f32.mrb[0].mxu0
        %v559 = vadd.f32 %v373, %v558
        %v560 = vpop.f32.mrb[0].mxu0
        %v561 = vpop.f32.mrb[0].mxu0
        %v562 = vadd.f32 %v373, %v561
        %v563 = vpop.f32.mrb[0].mxu0
        %564 = vmatprep.mubr.bf16.mxu0 0
        %565 = vmatmul.mubr.bf16.gmra.mrb[0].mxu0 %v466
        %v566 = vpop.f32.mrb[0].mxu0
        %v567 = vadd.f32 %v373, %v566
        %v568 = vpop.f32.mrb[0].mxu0
        %v569 = vpop.f32.mrb[0].mxu0
        %v570 = vadd.f32 %v373, %v569
        %v571 = vpop.f32.mrb[0].mxu0
        %572 = vmatprep.mubr.bf16.mxu0 0
        %573 = vmatmul.mubr.bf16.gmra.mrb[0].mxu0 %v469
        %v574 = vpop.f32.mrb[0].mxu0
        %v575 = vadd.f32 %v373, %v574
        %v576 = vpop.f32.mrb[0].mxu0
        %v577 = vpop.f32.mrb[0].mxu0
        %v578 = vadd.f32 %v373, %v577
        %v579 = vpop.f32.mrb[0].mxu0
        %580 = vmatprep.mubr.bf16.mxu0 0
        %581 = vmatmul.mubr.bf16.gmra.mrb[0].mxu0 %v472
        %v582 = vpop.f32.mrb[0].mxu0
        %v583 = vadd.f32 %v373, %v582
        %v584 = vpop.f32.mrb[0].mxu0
        %v585 = vpop.f32.mrb[0].mxu0
        %v586 = vadd.f32 %v373, %v585
        %v587 = vpop.f32.mrb[0].mxu0
        %588 = vmatprep.mubr.bf16.mxu0 0
        %589 = vmatmul.mubr.bf16.gmra.mrb[0].mxu0 %v475
        %v590 = vpop.f32.mrb[0].mxu0
        %v591 = vadd.f32 %v373, %v590
        %v592 = vpop.f32.mrb[0].mxu0
        %v593 = vpop.f32.mrb[0].mxu0
        %v594 = vadd.f32 %v373, %v593
        %v595 = vpop.f32.mrb[0].mxu0
        %596 = vmatprep.mubr.bf16.mxu0 0
        %597 = vmatmul.mubr.bf16.gmra.mrb[0].mxu0 %v478
        %v598 = vpop.f32.mrb[0].mxu0
        %v599 = vadd.f32 %v373, %v598
        %v600 = vpop.f32.mrb[0].mxu0
        %v601 = vpop.f32.mrb[0].mxu0
        %v602 = vadd.f32 %v373, %v601
        %v603 = vpop.f32.mrb[0].mxu0
        %604 = vmatprep.mubr.bf16.mxu0 0
        %605 = vmatmul.mubr.bf16.gmra.mrb[0].mxu0 %v481
        %v606 = vpop.f32.mrb[0].mxu0
        %v607 = vadd.f32 %v373, %v606
        %v608 = vpop.f32.mrb[0].mxu0
        %v609 = vpop.f32.mrb[0].mxu0
        %v610 = vadd.f32 %v373, %v609
        %v611 = vpop.f32.mrb[0].mxu0
        %612 = vmatprep.mubr.bf16.mxu0 0
        %613 = vmatmul.mubr.bf16.gmra.mrb[0].mxu0 %v484
        %v614 = vpop.f32.mrb[0].mxu0
        %v615 = vadd.f32 %v373, %v614
        %v616 = vpop.f32.mrb[0].mxu0
        %v617 = vpop.f32.mrb[0].mxu0
        %v618 = vadd.f32 %v373, %v617
        %v619 = vpop.f32.mrb[0].mxu0
        %620 = vmatprep.mubr.bf16.mxu0 0
        %621 = vmatmul.mubr.bf16.gmra.mrb[0].mxu0 %v487
        %v622 = vpop.f32.mrb[0].mxu0
        %v623 = vadd.f32 %v373, %v622
        %v624 = vpop.f32.mrb[0].mxu0
        %v625 = vpop.f32.mrb[0].mxu0
        %v626 = vadd.f32 %v373, %v625
        %v627 = vpop.f32.mrb[0].mxu0
        %628 = vmatprep.mubr.bf16.mxu0 0
        %629 = vmatmul.mubr.bf16.gmra.mrb[0].mxu0 %v490
        %v630 = vpop.f32.mrb[0].mxu0
        %v631 = vadd.f32 %v373, %v630
        %v632 = vpop.f32.mrb[0].mxu0
        %v633 = vpop.f32.mrb[0].mxu0
        %v634 = vadd.f32 %v373, %v633
        %v635 = vpop.f32.mrb[0].mxu0
        %636 = vmatprep.mubr.bf16.mxu0 0
        %637 = vmatmul.mubr.bf16.gmra.mrb[0].mxu0 %v493
        %v638 = vpop.f32.mrb[0].mxu0
        %v639 = vadd.f32 %v373, %v638
        %v640 = vpop.f32.mrb[0].mxu0
        %v641 = vpop.f32.mrb[0].mxu0
        %v642 = vadd.f32 %v373, %v641
        %v643 = vpop.f32.mrb[0].mxu0
        %644 = vmatprep.mubr.bf16.mxu0 0
        %645 = vmatmul.mubr.bf16.gmra.mrb[0].mxu0 %v496
        %v646 = vpop.f32.mrb[0].mxu0
        %v647 = vadd.f32 %v373, %v646
        %v648 = vpop.f32.mrb[0].mxu0
        %v649 = vpop.f32.mrb[0].mxu0
        %v650 = vadd.f32 %v373, %v649
        %v651 = vpop.f32.mrb[0].mxu0
        %652 = vmatprep.mubr.bf16.mxu0 0
        %653 = vmatmul.mubr.bf16.gmra.mrb[0].mxu0 %v499
        %v654 = vpop.f32.mrb[0].mxu0
        %v655 = vadd.f32 %v373, %v654
        %v656 = vpop.f32.mrb[0].mxu0
        %v657 = vpop.f32.mrb[0].mxu0
        %v658 = vadd.f32 %v373, %v657
        %v659 = vpop.f32.mrb[0].mxu0
        %660 = vmatprep.mubr.bf16.mxu0 0
        %661 = vmatmul.mubr.bf16.gmra.mrb[0].mxu0 %v502
        %v662 = vpop.f32.mrb[0].mxu0
        %v663 = vadd.f32 %v373, %v662
        %v664 = vpop.f32.mrb[0].mxu0
        %v665 = vpop.f32.mrb[0].mxu0
        %v666 = vadd.f32 %v373, %v665
        %v667 = vpop.f32.mrb[0].mxu0
        %668 = vdwg.mxu0
        %vm669 = vcmp.gt.f32.partialorder %v543, 0.0
        %vm670 = vcmp.gt.f32.partialorder %v546, 0.0
        %vm671 = vcmp.gt.f32.partialorder %v551, 0.0
        %vm672 = vcmp.gt.f32.partialorder %v554, 0.0
        %vm673 = vcmp.gt.f32.partialorder %v559, 0.0
        %vm674 = vcmp.gt.f32.partialorder %v562, 0.0
        %vm675 = vcmp.gt.f32.partialorder %v567, 0.0
        %vm676 = vcmp.gt.f32.partialorder %v570, 0.0
        %vm677 = vcmp.gt.f32.partialorder %v575, 0.0
        %vm678 = vcmp.gt.f32.partialorder %v578, 0.0
        %vm679 = vcmp.gt.f32.partialorder %v583, 0.0
        %vm680 = vcmp.gt.f32.partialorder %v586, 0.0
        %vm681 = vcmp.gt.f32.partialorder %v591, 0.0
        %vm682 = vcmp.gt.f32.partialorder %v594, 0.0
        %vm683 = vcmp.gt.f32.partialorder %v599, 0.0
        %vm684 = vcmp.gt.f32.partialorder %v602, 0.0
        %vm685 = vcmp.gt.f32.partialorder %v607, 0.0
        %vm686 = vcmp.gt.f32.partialorder %v610, 0.0
        %vm687 = vcmp.gt.f32.partialorder %v615, 0.0
        %vm688 = vcmp.gt.f32.partialorder %v618, 0.0
        %vm689 = vcmp.gt.f32.partialorder %v623, 0.0
        %vm690 = vcmp.gt.f32.partialorder %v626, 0.0
        %vm691 = vcmp.gt.f32.partialorder %v631, 0.0
        %vm692 = vcmp.gt.f32.partialorder %v634, 0.0
        %vm693 = vcmp.gt.f32.partialorder %v639, 0.0
        %vm694 = vcmp.gt.f32.partialorder %v642, 0.0
        %vm695 = vcmp.gt.f32.partialorder %v647, 0.0
        %vm696 = vcmp.gt.f32.partialorder %v650, 0.0
        %vm697 = vcmp.gt.f32.partialorder %v655, 0.0
        %vm698 = vcmp.gt.f32.partialorder %v658, 0.0
        %vm699 = vcmp.gt.f32.partialorder %v663, 0.0
        %vm700 = vcmp.gt.f32.partialorder %v666, 0.0
        %v701 = vmul.f32 %v543, 0.01
        %v702 = vmul.f32 %v546, 0.01
        %v703 = vmul.f32 %v551, 0.01
        %v704 = vmul.f32 %v554, 0.01
        %v705 = vmul.f32 %v559, 0.01
        %v706 = vmul.f32 %v562, 0.01
        %v707 = vmul.f32 %v567, 0.01
        %v708 = vmul.f32 %v570, 0.01
        %v709 = vmul.f32 %v575, 0.01
        %v710 = vmul.f32 %v578, 0.01
        %v711 = vmul.f32 %v583, 0.01
        %v712 = vmul.f32 %v586, 0.01
        %v713 = vmul.f32 %v591, 0.01
        %v714 = vmul.f32 %v594, 0.01
        %v715 = vmul.f32 %v599, 0.01
        %v716 = vmul.f32 %v602, 0.01
        %v717 = vmul.f32 %v607, 0.01
        %v718 = vmul.f32 %v610, 0.01
        %v719 = vmul.f32 %v615, 0.01
        %v720 = vmul.f32 %v618, 0.01
        %v721 = vmul.f32 %v623, 0.01
        %v722 = vmul.f32 %v626, 0.01
        %v723 = vmul.f32 %v631, 0.01
        %v724 = vmul.f32 %v634, 0.01
        %v725 = vmul.f32 %v639, 0.01
        %v726 = vmul.f32 %v642, 0.01
        %v727 = vmul.f32 %v647, 0.01
        %v728 = vmul.f32 %v650, 0.01
        %v729 = vmul.f32 %v655, 0.01
        %v730 = vmul.f32 %v658, 0.01
        %v731 = vmul.f32 %v663, 0.01
        %v732 = vmul.f32 %v666, 0.01
        %v733 = vsel %vm669, %v543, %v701
        %v734 = vsel %vm670, %v546, %v702
        %v735 = vsel %vm671, %v551, %v703
        %v736 = vsel %vm672, %v554, %v704
        %v737 = vsel %vm673, %v559, %v705
        %v738 = vsel %vm674, %v562, %v706
        %v739 = vsel %vm675, %v567, %v707
        %v740 = vsel %vm676, %v570, %v708
        %v741 = vsel %vm677, %v575, %v709
        %v742 = vsel %vm678, %v578, %v710
        %v743 = vsel %vm679, %v583, %v711
        %v744 = vsel %vm680, %v586, %v712
        %v745 = vsel %vm681, %v591, %v713
        %v746 = vsel %vm682, %v594, %v714
        %v747 = vsel %vm683, %v599, %v715
        %v748 = vsel %vm684, %v602, %v716
        %v749 = vsel %vm685, %v607, %v717
        %v750 = vsel %vm686, %v610, %v718
        %v751 = vsel %vm687, %v615, %v719
        %v752 = vsel %vm688, %v618, %v720
        %v753 = vsel %vm689, %v623, %v721
        %v754 = vsel %vm690, %v626, %v722
        %v755 = vsel %vm691, %v631, %v723
        %v756 = vsel %vm692, %v634, %v724
        %v757 = vsel %vm693, %v639, %v725
        %v758 = vsel %vm694, %v642, %v726
        %v759 = vsel %vm695, %v647, %v727
        %v760 = vsel %vm696, %v650, %v728
        %v761 = vsel %vm697, %v655, %v729
        %v762 = vsel %vm698, %v658, %v730
        %v763 = vsel %vm699, %v663, %v731
        %v764 = vsel %vm700, %v666, %v732
        %v765 = vpack.c.bf16 %v734, %v733
        %v766 = vpack.c.bf16 %v736, %v735
        %v767 = vpack.c.bf16 %v738, %v737
        %v768 = vpack.c.bf16 %v740, %v739
        %v769 = vpack.c.bf16 %v742, %v741
        %v770 = vpack.c.bf16 %v744, %v743
        %v771 = vpack.c.bf16 %v746, %v745
        %v772 = vpack.c.bf16 %v748, %v747
        %v773 = vpack.c.bf16 %v750, %v749
        %v774 = vpack.c.bf16 %v752, %v751
        %v775 = vpack.c.bf16 %v754, %v753
        %v776 = vpack.c.bf16 %v756, %v755
        %v777 = vpack.c.bf16 %v758, %v757
        %v778 = vpack.c.bf16 %v760, %v759
        %v779 = vpack.c.bf16 %v762, %v761
        %v780 = vpack.c.bf16 %v764, %v763
        %v781 = vld [vmem:[%s3] sm:$0xf]
        %v782 = vld [vmem:[%s3 + $0x4] sm:$0xf]
        %v783 = vld [vmem:[%s3 + $0x8] sm:$0xf]
        %v784 = vld [vmem:[%s3 + $0xc] sm:$0xf]
        %v785 = vld [vmem:[%s3 + $0x10] sm:$0xf]
        %v786 = vld [vmem:[%s3 + $0x14] sm:$0xf]
        %v787 = vld [vmem:[%s3 + $0x18] sm:$0xf]
        %v788 = vld [vmem:[%s3 + $0x1c] sm:$0xf]
        %v789 = vld [vmem:[%s3 + $0x20] sm:$0xf]
        %v790 = vld [vmem:[%s3 + $0x24] sm:$0xf]
        %v791 = vld [vmem:[%s3 + $0x28] sm:$0xf]
        %v792 = vld [vmem:[%s3 + $0x2c] sm:$0xf]
        %v793 = vld [vmem:[%s3 + $0x30] sm:$0xf]
        %v794 = vld [vmem:[%s3 + $0x34] sm:$0xf]
        %v795 = vld [vmem:[%s3 + $0x38] sm:$0xf]
        %v796 = vld [vmem:[%s3 + $0x3c] sm:$0xf]
        %v797 = vld [vmem:[%s4] sm:$0x1]
        %v799 = vlaneseq
        %v800 = vshrl.u32 %v799, 7
        %v801 = vsub.s32 0, %v800
        %v802 = vrot.slane %v797, %v801
        %v820 = vunpack.c.l.b16 %v781
        %v821 = vunpack.c.l.b16 %v782
        %v822 = vunpack.c.l.b16 %v783
        %v823 = vunpack.c.l.b16 %v784
        %v824 = vunpack.c.l.b16 %v785
        %v825 = vunpack.c.l.b16 %v786
        %v826 = vunpack.c.l.b16 %v787
        %v827 = vunpack.c.l.b16 %v788
        %v828 = vunpack.c.l.b16 %v789
        %v829 = vunpack.c.l.b16 %v790
        %v830 = vunpack.c.l.b16 %v791
        %v831 = vunpack.c.l.b16 %v792
        %v832 = vunpack.c.l.b16 %v793
        %v833 = vunpack.c.l.b16 %v794
        %v834 = vunpack.c.l.b16 %v795
        %v835 = vunpack.c.l.b16 %v796
        %v836 = vpack.c.b16 %v821, %v820
        %v837 = vpack.c.b16 %v823, %v822
        %v838 = vpack.c.b16 %v825, %v824
        %v839 = vpack.c.b16 %v827, %v826
        %v840 = vpack.c.b16 %v829, %v828
        %v841 = vpack.c.b16 %v831, %v830
        %v842 = vpack.c.b16 %v833, %v832
        %v843 = vpack.c.b16 %v835, %v834
        %852 = vmatprep.subr.bf16.mxu0 0
        %853 = vmatpush1.bf16.msra.mxu0 %v836
        %854 = vmatprep.subr.bf16.mxu0 0
        %855 = vmatpush1.bf16.msra.mxu0 %v837
        %856 = vmatprep.subr.bf16.mxu0 0
        %857 = vmatpush1.bf16.msra.mxu0 %v838
        %858 = vmatprep.subr.bf16.mxu0 0
        %859 = vmatpush1.bf16.msra.mxu0 %v839
        %860 = vmatprep.subr.bf16.mxu0 0
        %861 = vmatpush1.bf16.msra.mxu0 %v840
        %862 = vmatprep.subr.bf16.mxu0 0
        %863 = vmatpush1.bf16.msra.mxu0 %v841
        %864 = vmatprep.subr.bf16.mxu0 0
        %865 = vmatpush1.bf16.msra.mxu0 %v842
        %866 = vmatprep.subr.bf16.mxu0 0
        %867 = vmatpush1.bf16.msra.mxu0 %v843
        %868 = vmatprep.subr.bf16.mxu0 0
        %869 = vmatpush1.bf16.msra.mxu0 0
        %870 = vmatprep.subr.bf16.mxu0 0
        %871 = vmatpush1.bf16.msra.mxu0 0
        %872 = vmatprep.subr.bf16.mxu0 0
        %873 = vmatpush1.bf16.msra.mxu0 0
        %874 = vmatprep.subr.bf16.mxu0 0
        %875 = vmatpush1.bf16.msra.mxu0 0
        %876 = vmatprep.subr.bf16.mxu0 0
        %877 = vmatpush1.bf16.msra.mxu0 0
        %878 = vmatprep.subr.bf16.mxu0 0
        %879 = vmatpush1.bf16.msra.mxu0 0
        %880 = vmatprep.subr.bf16.mxu0 0
        %881 = vmatpush1.bf16.msra.mxu0 0
        %882 = vmatprep.subr.bf16.mxu0 0
        %883 = vmatpush1.bf16.msra.mxu0 0
        %884 = vmatprep.mubr.bf16.mxu0 0
        %885 = vmatmul.mubr.bf16.gmra.mrb[0].mxu0 %v765
        %v886 = vpop.f32.mrb[0].mxu0
        %v887 = vadd.f32 %v802, %v886
        %v888 = vpop.f32.mrb[0].mxu0
        %v889 = vpop.f32.mrb[0].mxu0
        %v890 = vadd.f32 %v802, %v889
        %v891 = vpop.f32.mrb[0].mxu0
        %892 = vmatprep.mubr.bf16.mxu0 0
        %893 = vmatmul.mubr.bf16.gmra.mrb[0].mxu0 %v766
        %v894 = vpop.f32.mrb[0].mxu0
        %v895 = vadd.f32 %v802, %v894
        %v896 = vpop.f32.mrb[0].mxu0
        %v897 = vpop.f32.mrb[0].mxu0
        %v898 = vadd.f32 %v802, %v897
        %v899 = vpop.f32.mrb[0].mxu0
        %900 = vmatprep.mubr.bf16.mxu0 0
        %901 = vmatmul.mubr.bf16.gmra.mrb[0].mxu0 %v767
        %v902 = vpop.f32.mrb[0].mxu0
        %v903 = vadd.f32 %v802, %v902
        %v904 = vpop.f32.mrb[0].mxu0
        %v905 = vpop.f32.mrb[0].mxu0
        %v906 = vadd.f32 %v802, %v905
        %v907 = vpop.f32.mrb[0].mxu0
        %908 = vmatprep.mubr.bf16.mxu0 0
        %909 = vmatmul.mubr.bf16.gmra.mrb[0].mxu0 %v768
        %v910 = vpop.f32.mrb[0].mxu0
        %v911 = vadd.f32 %v802, %v910
        %v912 = vpop.f32.mrb[0].mxu0
        %v913 = vpop.f32.mrb[0].mxu0
        %v914 = vadd.f32 %v802, %v913
        %v915 = vpop.f32.mrb[0].mxu0
        %916 = vmatprep.mubr.bf16.mxu0 0
        %917 = vmatmul.mubr.bf16.gmra.mrb[0].mxu0 %v769
        %v918 = vpop.f32.mrb[0].mxu0
        %v919 = vadd.f32 %v802, %v918
        %v920 = vpop.f32.mrb[0].mxu0
        %v921 = vpop.f32.mrb[0].mxu0
        %v922 = vadd.f32 %v802, %v921
        %v923 = vpop.f32.mrb[0].mxu0
        %924 = vmatprep.mubr.bf16.mxu0 0
        %925 = vmatmul.mubr.bf16.gmra.mrb[0].mxu0 %v770
        %v926 = vpop.f32.mrb[0].mxu0
        %v927 = vadd.f32 %v802, %v926
        %v928 = vpop.f32.mrb[0].mxu0
        %v929 = vpop.f32.mrb[0].mxu0
        %v930 = vadd.f32 %v802, %v929
        %v931 = vpop.f32.mrb[0].mxu0
        %932 = vmatprep.mubr.bf16.mxu0 0
        %933 = vmatmul.mubr.bf16.gmra.mrb[0].mxu0 %v771
        %v934 = vpop.f32.mrb[0].mxu0
        %v935 = vadd.f32 %v802, %v934
        %v936 = vpop.f32.mrb[0].mxu0
        %v937 = vpop.f32.mrb[0].mxu0
        %v938 = vadd.f32 %v802, %v937
        %v939 = vpop.f32.mrb[0].mxu0
        %940 = vmatprep.mubr.bf16.mxu0 0
        %941 = vmatmul.mubr.bf16.gmra.mrb[0].mxu0 %v772
        %v942 = vpop.f32.mrb[0].mxu0
        %v943 = vadd.f32 %v802, %v942
        %v944 = vpop.f32.mrb[0].mxu0
        %v945 = vpop.f32.mrb[0].mxu0
        %v946 = vadd.f32 %v802, %v945
        %v947 = vpop.f32.mrb[0].mxu0
        %948 = vmatprep.mubr.bf16.mxu0 0
        %949 = vmatmul.mubr.bf16.gmra.mrb[0].mxu0 %v773
        %v950 = vpop.f32.mrb[0].mxu0
        %v951 = vadd.f32 %v802, %v950
        %v952 = vpop.f32.mrb[0].mxu0
        %v953 = vpop.f32.mrb[0].mxu0
        %v954 = vadd.f32 %v802, %v953
        %v955 = vpop.f32.mrb[0].mxu0
        %956 = vmatprep.mubr.bf16.mxu0 0
        %957 = vmatmul.mubr.bf16.gmra.mrb[0].mxu0 %v774
        %v958 = vpop.f32.mrb[0].mxu0
        %v959 = vadd.f32 %v802, %v958
        %v960 = vpop.f32.mrb[0].mxu0
        %v961 = vpop.f32.mrb[0].mxu0
        %v962 = vadd.f32 %v802, %v961
        %v963 = vpop.f32.mrb[0].mxu0
        %964 = vmatprep.mubr.bf16.mxu0 0
        %965 = vmatmul.mubr.bf16.gmra.mrb[0].mxu0 %v775
        %v966 = vpop.f32.mrb[0].mxu0
        %v967 = vadd.f32 %v802, %v966
        %v968 = vpop.f32.mrb[0].mxu0
        %v969 = vpop.f32.mrb[0].mxu0
        %v970 = vadd.f32 %v802, %v969
        %v971 = vpop.f32.mrb[0].mxu0
        %972 = vmatprep.mubr.bf16.mxu0 0
        %973 = vmatmul.mubr.bf16.gmra.mrb[0].mxu0 %v776
        %v974 = vpop.f32.mrb[0].mxu0
        %v975 = vadd.f32 %v802, %v974
        %v976 = vpop.f32.mrb[0].mxu0
        %v977 = vpop.f32.mrb[0].mxu0
        %v978 = vadd.f32 %v802, %v977
        %v979 = vpop.f32.mrb[0].mxu0
        %980 = vmatprep.mubr.bf16.mxu0 0
        %981 = vmatmul.mubr.bf16.gmra.mrb[0].mxu0 %v777
        %v982 = vpop.f32.mrb[0].mxu0
        %v983 = vadd.f32 %v802, %v982
        %v984 = vpop.f32.mrb[0].mxu0
        %v985 = vpop.f32.mrb[0].mxu0
        %v986 = vadd.f32 %v802, %v985
        %v987 = vpop.f32.mrb[0].mxu0
        %988 = vmatprep.mubr.bf16.mxu0 0
        %989 = vmatmul.mubr.bf16.gmra.mrb[0].mxu0 %v778
        %v990 = vpop.f32.mrb[0].mxu0
        %v991 = vadd.f32 %v802, %v990
        %v992 = vpop.f32.mrb[0].mxu0
        %v993 = vpop.f32.mrb[0].mxu0
        %v994 = vadd.f32 %v802, %v993
        %v995 = vpop.f32.mrb[0].mxu0
        %996 = vmatprep.mubr.bf16.mxu0 0
        %997 = vmatmul.mubr.bf16.gmra.mrb[0].mxu0 %v779
        %v998 = vpop.f32.mrb[0].mxu0
        %v999 = vadd.f32 %v802, %v998
        %v1000 = vpop.f32.mrb[0].mxu0
        %v1001 = vpop.f32.mrb[0].mxu0
        %v1002 = vadd.f32 %v802, %v1001
        %v1003 = vpop.f32.mrb[0].mxu0
        %1004 = vmatprep.mubr.bf16.mxu0 0
        %1005 = vmatmul.mubr.bf16.gmra.mrb[0].mxu0 %v780
        %v1006 = vpop.f32.mrb[0].mxu0
        %v1007 = vadd.f32 %v802, %v1006
        %v1008 = vpop.f32.mrb[0].mxu0
        %v1009 = vpop.f32.mrb[0].mxu0
        %v1010 = vadd.f32 %v802, %v1009
        %v1011 = vpop.f32.mrb[0].mxu0
        %1012 = vdwg.mxu0
        %1013 = vadd.xlane.f32.xlu0 %v887
        %v1014 = vpop.xlane.xlu0 %1013
        %1015 = vadd.xlane.f32.xlu0 %v890
        %v1016 = vpop.xlane.xlu0 %1015
        %1017 = vadd.xlane.f32.xlu0 %v895
        %v1018 = vpop.xlane.xlu0 %1017
        %1019 = vadd.xlane.f32.xlu0 %v898
        %v1020 = vpop.xlane.xlu0 %1019
        %1021 = vadd.xlane.f32.xlu0 %v903
        %v1022 = vpop.xlane.xlu0 %1021
        %1023 = vadd.xlane.f32.xlu0 %v906
        %v1024 = vpop.xlane.xlu0 %1023
        %1025 = vadd.xlane.f32.xlu0 %v911
        %v1026 = vpop.xlane.xlu0 %1025
        %1027 = vadd.xlane.f32.xlu0 %v914
        %v1028 = vpop.xlane.xlu0 %1027
        %1029 = vadd.xlane.f32.xlu0 %v919
        %v1030 = vpop.xlane.xlu0 %1029
        %1031 = vadd.xlane.f32.xlu0 %v922
        %v1032 = vpop.xlane.xlu0 %1031
        %1033 = vadd.xlane.f32.xlu0 %v927
        %v1034 = vpop.xlane.xlu0 %1033
        %1035 = vadd.xlane.f32.xlu0 %v930
        %v1036 = vpop.xlane.xlu0 %1035
        %1037 = vadd.xlane.f32.xlu0 %v935
        %v1038 = vpop.xlane.xlu0 %1037
        %1039 = vadd.xlane.f32.xlu0 %v938
        %v1040 = vpop.xlane.xlu0 %1039
        %1041 = vadd.xlane.f32.xlu0 %v943
        %v1042 = vpop.xlane.xlu0 %1041
        %1043 = vadd.xlane.f32.xlu0 %v946
        %v1044 = vpop.xlane.xlu0 %1043
        %1045 = vadd.xlane.f32.xlu0 %v951
        %v1046 = vpop.xlane.xlu0 %1045
        %1047 = vadd.xlane.f32.xlu0 %v954
        %v1048 = vpop.xlane.xlu0 %1047
        %1049 = vadd.xlane.f32.xlu0 %v959
        %v1050 = vpop.xlane.xlu0 %1049
        %1051 = vadd.xlane.f32.xlu0 %v962
        %v1052 = vpop.xlane.xlu0 %1051
        %1053 = vadd.xlane.f32.xlu0 %v967
        %v1054 = vpop.xlane.xlu0 %1053
        %1055 = vadd.xlane.f32.xlu0 %v970
        %v1056 = vpop.xlane.xlu0 %1055
        %1057 = vadd.xlane.f32.xlu0 %v975
        %v1058 = vpop.xlane.xlu0 %1057
        %1059 = vadd.xlane.f32.xlu0 %v978
        %v1060 = vpop.xlane.xlu0 %1059
        %1061 = vadd.xlane.f32.xlu0 %v983
        %v1062 = vpop.xlane.xlu0 %1061
        %1063 = vadd.xlane.f32.xlu0 %v986
        %v1064 = vpop.xlane.xlu0 %1063
        %1065 = vadd.xlane.f32.xlu0 %v991
        %v1066 = vpop.xlane.xlu0 %1065
        %1067 = vadd.xlane.f32.xlu0 %v994
        %v1068 = vpop.xlane.xlu0 %1067
        %1069 = vadd.xlane.f32.xlu0 %v999
        %v1070 = vpop.xlane.xlu0 %1069
        %1071 = vadd.xlane.f32.xlu0 %v1002
        %v1072 = vpop.xlane.xlu0 %1071
        %1073 = vadd.xlane.f32.xlu0 %v1007
        %v1074 = vpop.xlane.xlu0 %1073
        %1075 = vadd.xlane.f32.xlu0 %v1010
        %v1076 = vpop.xlane.xlu0 %1075
        %v1077 = vmul.f32 %v887, %v887
        %v1078 = vmul.f32 %v890, %v890
        %v1079 = vmul.f32 %v895, %v895
        %v1080 = vmul.f32 %v898, %v898
        %v1081 = vmul.f32 %v903, %v903
        %v1082 = vmul.f32 %v906, %v906
        %v1083 = vmul.f32 %v911, %v911
        %v1084 = vmul.f32 %v914, %v914
        %v1085 = vmul.f32 %v919, %v919
        %v1086 = vmul.f32 %v922, %v922
        %v1087 = vmul.f32 %v927, %v927
        %v1088 = vmul.f32 %v930, %v930
        %v1089 = vmul.f32 %v935, %v935
        %v1090 = vmul.f32 %v938, %v938
        %v1091 = vmul.f32 %v943, %v943
        %v1092 = vmul.f32 %v946, %v946
        %v1093 = vmul.f32 %v951, %v951
        %v1094 = vmul.f32 %v954, %v954
        %v1095 = vmul.f32 %v959, %v959
        %v1096 = vmul.f32 %v962, %v962
        %v1097 = vmul.f32 %v967, %v967
        %v1098 = vmul.f32 %v970, %v970
        %v1099 = vmul.f32 %v975, %v975
        %v1100 = vmul.f32 %v978, %v978
        %v1101 = vmul.f32 %v983, %v983
        %v1102 = vmul.f32 %v986, %v986
        %v1103 = vmul.f32 %v991, %v991
        %v1104 = vmul.f32 %v994, %v994
        %v1105 = vmul.f32 %v999, %v999
        %v1106 = vmul.f32 %v1002, %v1002
        %v1107 = vmul.f32 %v1007, %v1007
        %v1108 = vmul.f32 %v1010, %v1010
        %1109 = vadd.xlane.f32.xlu0 %v1077
        %v1110 = vpop.xlane.xlu0 %1109
        %1111 = vadd.xlane.f32.xlu0 %v1078
        %v1112 = vpop.xlane.xlu0 %1111
        %1113 = vadd.xlane.f32.xlu0 %v1079
        %v1114 = vpop.xlane.xlu0 %1113
        %1115 = vadd.xlane.f32.xlu0 %v1080
        %v1116 = vpop.xlane.xlu0 %1115
        %1117 = vadd.xlane.f32.xlu0 %v1081
        %v1118 = vpop.xlane.xlu0 %1117
        %1119 = vadd.xlane.f32.xlu0 %v1082
        %v1120 = vpop.xlane.xlu0 %1119
        %1121 = vadd.xlane.f32.xlu0 %v1083
        %v1122 = vpop.xlane.xlu0 %1121
        %1123 = vadd.xlane.f32.xlu0 %v1084
        %v1124 = vpop.xlane.xlu0 %1123
        %1125 = vadd.xlane.f32.xlu0 %v1085
        %v1126 = vpop.xlane.xlu0 %1125
        %1127 = vadd.xlane.f32.xlu0 %v1086
        %v1128 = vpop.xlane.xlu0 %1127
        %1129 = vadd.xlane.f32.xlu0 %v1087
        %v1130 = vpop.xlane.xlu0 %1129
        %1131 = vadd.xlane.f32.xlu0 %v1088
        %v1132 = vpop.xlane.xlu0 %1131
        %1133 = vadd.xlane.f32.xlu0 %v1089
        %v1134 = vpop.xlane.xlu0 %1133
        %1135 = vadd.xlane.f32.xlu0 %v1090
        %v1136 = vpop.xlane.xlu0 %1135
        %1137 = vadd.xlane.f32.xlu0 %v1091
        %v1138 = vpop.xlane.xlu0 %1137
        %1139 = vadd.xlane.f32.xlu0 %v1092
        %v1140 = vpop.xlane.xlu0 %1139
        %1141 = vadd.xlane.f32.xlu0 %v1093
        %v1142 = vpop.xlane.xlu0 %1141
        %1143 = vadd.xlane.f32.xlu0 %v1094
        %v1144 = vpop.xlane.xlu0 %1143
        %1145 = vadd.xlane.f32.xlu0 %v1095
        %v1146 = vpop.xlane.xlu0 %1145
        %1147 = vadd.xlane.f32.xlu0 %v1096
        %v1148 = vpop.xlane.xlu0 %1147
        %1149 = vadd.xlane.f32.xlu0 %v1097
        %v1150 = vpop.xlane.xlu0 %1149
        %1151 = vadd.xlane.f32.xlu0 %v1098
        %v1152 = vpop.xlane.xlu0 %1151
        %1153 = vadd.xlane.f32.xlu0 %v1099
        %v1154 = vpop.xlane.xlu0 %1153
        %1155 = vadd.xlane.f32.xlu0 %v1100
        %v1156 = vpop.xlane.xlu0 %1155
        %1157 = vadd.xlane.f32.xlu0 %v1101
        %v1158 = vpop.xlane.xlu0 %1157
        %1159 = vadd.xlane.f32.xlu0 %v1102
        %v1160 = vpop.xlane.xlu0 %1159
        %1161 = vadd.xlane.f32.xlu0 %v1103
        %v1162 = vpop.xlane.xlu0 %1161
        %1163 = vadd.xlane.f32.xlu0 %v1104
        %v1164 = vpop.xlane.xlu0 %1163
        %1165 = vadd.xlane.f32.xlu0 %v1105
        %v1166 = vpop.xlane.xlu0 %1165
        %1167 = vadd.xlane.f32.xlu0 %v1106
        %v1168 = vpop.xlane.xlu0 %1167
        %1169 = vadd.xlane.f32.xlu0 %v1107
        %v1170 = vpop.xlane.xlu0 %1169
        %1171 = vadd.xlane.f32.xlu0 %v1108
        %v1172 = vpop.xlane.xlu0 %1171
        %v1173 = vmul.f32 %v1014, 0.03125
        %v1174 = vmul.f32 %v1016, 0.03125
        %v1175 = vmul.f32 %v1018, 0.03125
        %v1176 = vmul.f32 %v1020, 0.03125
        %v1177 = vmul.f32 %v1022, 0.03125
        %v1178 = vmul.f32 %v1024, 0.03125
        %v1179 = vmul.f32 %v1026, 0.03125
        %v1180 = vmul.f32 %v1028, 0.03125
        %v1181 = vmul.f32 %v1030, 0.03125
        %v1182 = vmul.f32 %v1032, 0.03125
        %v1183 = vmul.f32 %v1034, 0.03125
        %v1184 = vmul.f32 %v1036, 0.03125
        %v1185 = vmul.f32 %v1038, 0.03125
        %v1186 = vmul.f32 %v1040, 0.03125
        %v1187 = vmul.f32 %v1042, 0.03125
        %v1188 = vmul.f32 %v1044, 0.03125
        %v1189 = vmul.f32 %v1046, 0.03125
        %v1190 = vmul.f32 %v1048, 0.03125
        %v1191 = vmul.f32 %v1050, 0.03125
        %v1192 = vmul.f32 %v1052, 0.03125
        %v1193 = vmul.f32 %v1054, 0.03125
        %v1194 = vmul.f32 %v1056, 0.03125
        %v1195 = vmul.f32 %v1058, 0.03125
        %v1196 = vmul.f32 %v1060, 0.03125
        %v1197 = vmul.f32 %v1062, 0.03125
        %v1198 = vmul.f32 %v1064, 0.03125
        %v1199 = vmul.f32 %v1066, 0.03125
        %v1200 = vmul.f32 %v1068, 0.03125
        %v1201 = vmul.f32 %v1070, 0.03125
        %v1202 = vmul.f32 %v1072, 0.03125
        %v1203 = vmul.f32 %v1074, 0.03125
        %v1204 = vmul.f32 %v1076, 0.03125
        %v1205 = vmul.f32 %v1110, 0.03125
        %v1206 = vmul.f32 %v1112, 0.03125
        %v1207 = vmul.f32 %v1114, 0.03125
        %v1208 = vmul.f32 %v1116, 0.03125
        %v1209 = vmul.f32 %v1118, 0.03125
        %v1210 = vmul.f32 %v1120, 0.03125
        %v1211 = vmul.f32 %v1122, 0.03125
        %v1212 = vmul.f32 %v1124, 0.03125
        %v1213 = vmul.f32 %v1126, 0.03125
        %v1214 = vmul.f32 %v1128, 0.03125
        %v1215 = vmul.f32 %v1130, 0.03125
        %v1216 = vmul.f32 %v1132, 0.03125
        %v1217 = vmul.f32 %v1134, 0.03125
        %v1218 = vmul.f32 %v1136, 0.03125
        %v1219 = vmul.f32 %v1138, 0.03125
        %v1220 = vmul.f32 %v1140, 0.03125
        %v1221 = vmul.f32 %v1142, 0.03125
        %v1222 = vmul.f32 %v1144, 0.03125
        %v1223 = vmul.f32 %v1146, 0.03125
        %v1224 = vmul.f32 %v1148, 0.03125
        %v1225 = vmul.f32 %v1150, 0.03125
        %v1226 = vmul.f32 %v1152, 0.03125
        %v1227 = vmul.f32 %v1154, 0.03125
        %v1228 = vmul.f32 %v1156, 0.03125
        %v1229 = vmul.f32 %v1158, 0.03125
        %v1230 = vmul.f32 %v1160, 0.03125
        %v1231 = vmul.f32 %v1162, 0.03125
        %v1232 = vmul.f32 %v1164, 0.03125
        %v1233 = vmul.f32 %v1166, 0.03125
        %v1234 = vmul.f32 %v1168, 0.03125
        %v1235 = vmul.f32 %v1170, 0.03125
        %v1236 = vmul.f32 %v1172, 0.03125
        %v1237 = vmul.f32 %v1173, %v1173
        %v1238 = vmul.f32 %v1174, %v1174
        %v1239 = vmul.f32 %v1175, %v1175
        %v1240 = vmul.f32 %v1176, %v1176
        %v1241 = vmul.f32 %v1177, %v1177
        %v1242 = vmul.f32 %v1178, %v1178
        %v1243 = vmul.f32 %v1179, %v1179
        %v1244 = vmul.f32 %v1180, %v1180
        %v1245 = vmul.f32 %v1181, %v1181
        %v1246 = vmul.f32 %v1182, %v1182
        %v1247 = vmul.f32 %v1183, %v1183
        %v1248 = vmul.f32 %v1184, %v1184
        %v1249 = vmul.f32 %v1185, %v1185
        %v1250 = vmul.f32 %v1186, %v1186
        %v1251 = vmul.f32 %v1187, %v1187
        %v1252 = vmul.f32 %v1188, %v1188
        %v1253 = vmul.f32 %v1189, %v1189
        %v1254 = vmul.f32 %v1190, %v1190
        %v1255 = vmul.f32 %v1191, %v1191
        %v1256 = vmul.f32 %v1192, %v1192
        %v1257 = vmul.f32 %v1193, %v1193
        %v1258 = vmul.f32 %v1194, %v1194
        %v1259 = vmul.f32 %v1195, %v1195
        %v1260 = vmul.f32 %v1196, %v1196
        %v1261 = vmul.f32 %v1197, %v1197
        %v1262 = vmul.f32 %v1198, %v1198
        %v1263 = vmul.f32 %v1199, %v1199
        %v1264 = vmul.f32 %v1200, %v1200
        %v1265 = vmul.f32 %v1201, %v1201
        %v1266 = vmul.f32 %v1202, %v1202
        %v1267 = vmul.f32 %v1203, %v1203
        %v1268 = vmul.f32 %v1204, %v1204
        %v1269 = vsub.f32 %v1205, %v1237
        %v1270 = vsub.f32 %v1206, %v1238
        %v1271 = vsub.f32 %v1207, %v1239
        %v1272 = vsub.f32 %v1208, %v1240
        %v1273 = vsub.f32 %v1209, %v1241
        %v1274 = vsub.f32 %v1210, %v1242
        %v1275 = vsub.f32 %v1211, %v1243
        %v1276 = vsub.f32 %v1212, %v1244
        %v1277 = vsub.f32 %v1213, %v1245
        %v1278 = vsub.f32 %v1214, %v1246
        %v1279 = vsub.f32 %v1215, %v1247
        %v1280 = vsub.f32 %v1216, %v1248
        %v1281 = vsub.f32 %v1217, %v1249
        %v1282 = vsub.f32 %v1218, %v1250
        %v1283 = vsub.f32 %v1219, %v1251
        %v1284 = vsub.f32 %v1220, %v1252
        %v1285 = vsub.f32 %v1221, %v1253
        %v1286 = vsub.f32 %v1222, %v1254
        %v1287 = vsub.f32 %v1223, %v1255
        %v1288 = vsub.f32 %v1224, %v1256
        %v1289 = vsub.f32 %v1225, %v1257
        %v1290 = vsub.f32 %v1226, %v1258
        %v1291 = vsub.f32 %v1227, %v1259
        %v1292 = vsub.f32 %v1228, %v1260
        %v1293 = vsub.f32 %v1229, %v1261
        %v1294 = vsub.f32 %v1230, %v1262
        %v1295 = vsub.f32 %v1231, %v1263
        %v1296 = vsub.f32 %v1232, %v1264
        %v1297 = vsub.f32 %v1233, %v1265
        %v1298 = vsub.f32 %v1234, %v1266
        %v1299 = vsub.f32 %v1235, %v1267
        %v1300 = vsub.f32 %v1236, %v1268
        %v1301 = vsub.f32 %v887, %v1173
        %v1302 = vsub.f32 %v890, %v1174
        %v1303 = vsub.f32 %v895, %v1175
        %v1304 = vsub.f32 %v898, %v1176
        %v1305 = vsub.f32 %v903, %v1177
        %v1306 = vsub.f32 %v906, %v1178
        %v1307 = vsub.f32 %v911, %v1179
        %v1308 = vsub.f32 %v914, %v1180
        %v1309 = vsub.f32 %v919, %v1181
        %v1310 = vsub.f32 %v922, %v1182
        %v1311 = vsub.f32 %v927, %v1183
        %v1312 = vsub.f32 %v930, %v1184
        %v1313 = vsub.f32 %v935, %v1185
        %v1314 = vsub.f32 %v938, %v1186
        %v1315 = vsub.f32 %v943, %v1187
        %v1316 = vsub.f32 %v946, %v1188
        %v1317 = vsub.f32 %v951, %v1189
        %v1318 = vsub.f32 %v954, %v1190
        %v1319 = vsub.f32 %v959, %v1191
        %v1320 = vsub.f32 %v962, %v1192
        %v1321 = vsub.f32 %v967, %v1193
        %v1322 = vsub.f32 %v970, %v1194
        %v1323 = vsub.f32 %v975, %v1195
        %v1324 = vsub.f32 %v978, %v1196
        %v1325 = vsub.f32 %v983, %v1197
        %v1326 = vsub.f32 %v986, %v1198
        %v1327 = vsub.f32 %v991, %v1199
        %v1328 = vsub.f32 %v994, %v1200
        %v1329 = vsub.f32 %v999, %v1201
        %v1330 = vsub.f32 %v1002, %v1202
        %v1331 = vsub.f32 %v1007, %v1203
        %v1332 = vsub.f32 %v1010, %v1204
        %v1333 = vadd.f32 %v1269, 1e-05
        %v1334 = vadd.f32 %v1270, 1e-05
        %v1335 = vadd.f32 %v1271, 1e-05
        %v1336 = vadd.f32 %v1272, 1e-05
        %v1337 = vadd.f32 %v1273, 1e-05
        %v1338 = vadd.f32 %v1274, 1e-05
        %v1339 = vadd.f32 %v1275, 1e-05
        %v1340 = vadd.f32 %v1276, 1e-05
        %v1341 = vadd.f32 %v1277, 1e-05
        %v1342 = vadd.f32 %v1278, 1e-05
        %v1343 = vadd.f32 %v1279, 1e-05
        %v1344 = vadd.f32 %v1280, 1e-05
        %v1345 = vadd.f32 %v1281, 1e-05
        %v1346 = vadd.f32 %v1282, 1e-05
        %v1347 = vadd.f32 %v1283, 1e-05
        %v1348 = vadd.f32 %v1284, 1e-05
        %v1349 = vadd.f32 %v1285, 1e-05
        %v1350 = vadd.f32 %v1286, 1e-05
        %v1351 = vadd.f32 %v1287, 1e-05
        %v1352 = vadd.f32 %v1288, 1e-05
        %v1353 = vadd.f32 %v1289, 1e-05
        %v1354 = vadd.f32 %v1290, 1e-05
        %v1355 = vadd.f32 %v1291, 1e-05
        %v1356 = vadd.f32 %v1292, 1e-05
        %v1357 = vadd.f32 %v1293, 1e-05
        %v1358 = vadd.f32 %v1294, 1e-05
        %v1359 = vadd.f32 %v1295, 1e-05
        %v1360 = vadd.f32 %v1296, 1e-05
        %v1361 = vadd.f32 %v1297, 1e-05
        %v1362 = vadd.f32 %v1298, 1e-05
        %v1363 = vadd.f32 %v1299, 1e-05
        %v1364 = vadd.f32 %v1300, 1e-05
        %v1365 = vrsqrt.pop %v1333
        %v1366 = vrsqrt.pop %v1334
        %v1367 = vrsqrt.pop %v1335
        %v1368 = vrsqrt.pop %v1336
        %v1369 = vrsqrt.pop %v1337
        %v1370 = vrsqrt.pop %v1338
        %v1371 = vrsqrt.pop %v1339
        %v1372 = vrsqrt.pop %v1340
        %v1373 = vrsqrt.pop %v1341
        %v1374 = vrsqrt.pop %v1342
        %v1375 = vrsqrt.pop %v1343
        %v1376 = vrsqrt.pop %v1344
        %v1377 = vrsqrt.pop %v1345
        %v1378 = vrsqrt.pop %v1346
        %v1379 = vrsqrt.pop %v1347
        %v1380 = vrsqrt.pop %v1348
        %v1381 = vrsqrt.pop %v1349
        %v1382 = vrsqrt.pop %v1350
        %v1383 = vrsqrt.pop %v1351
        %v1384 = vrsqrt.pop %v1352
        %v1385 = vrsqrt.pop %v1353
        %v1386 = vrsqrt.pop %v1354
        %v1387 = vrsqrt.pop %v1355
        %v1388 = vrsqrt.pop %v1356
        %v1389 = vrsqrt.pop %v1357
        %v1390 = vrsqrt.pop %v1358
        %v1391 = vrsqrt.pop %v1359
        %v1392 = vrsqrt.pop %v1360
        %v1393 = vrsqrt.pop %v1361
        %v1394 = vrsqrt.pop %v1362
        %v1395 = vrsqrt.pop %v1363
        %v1396 = vrsqrt.pop %v1364
        %v1397 = vmul.f32 %v1301, %v1365
        %v1398 = vmul.f32 %v1302, %v1366
        %v1399 = vmul.f32 %v1303, %v1367
        %v1400 = vmul.f32 %v1304, %v1368
        %v1401 = vmul.f32 %v1305, %v1369
        %v1402 = vmul.f32 %v1306, %v1370
        %v1403 = vmul.f32 %v1307, %v1371
        %v1404 = vmul.f32 %v1308, %v1372
        %v1405 = vmul.f32 %v1309, %v1373
        %v1406 = vmul.f32 %v1310, %v1374
        %v1407 = vmul.f32 %v1311, %v1375
        %v1408 = vmul.f32 %v1312, %v1376
        %v1409 = vmul.f32 %v1313, %v1377
        %v1410 = vmul.f32 %v1314, %v1378
        %v1411 = vmul.f32 %v1315, %v1379
        %v1412 = vmul.f32 %v1316, %v1380
        %v1413 = vmul.f32 %v1317, %v1381
        %v1414 = vmul.f32 %v1318, %v1382
        %v1415 = vmul.f32 %v1319, %v1383
        %v1416 = vmul.f32 %v1320, %v1384
        %v1417 = vmul.f32 %v1321, %v1385
        %v1418 = vmul.f32 %v1322, %v1386
        %v1419 = vmul.f32 %v1323, %v1387
        %v1420 = vmul.f32 %v1324, %v1388
        %v1421 = vmul.f32 %v1325, %v1389
        %v1422 = vmul.f32 %v1326, %v1390
        %v1423 = vmul.f32 %v1327, %v1391
        %v1424 = vmul.f32 %v1328, %v1392
        %v1425 = vmul.f32 %v1329, %v1393
        %v1426 = vmul.f32 %v1330, %v1394
        %v1427 = vmul.f32 %v1331, %v1395
        %v1428 = vmul.f32 %v1332, %v1396
        %v1429 = vld [vmem:[%s5] sm:$0x1]
        %v1431 = vlaneseq
        %v1432 = vshrl.u32 %v1431, 7
        %v1433 = vsub.s32 0, %v1432
        %v1434 = vrot.slane %v1429, %v1433
        %v1436 = vmul.f32 %v1397, %v1434
        %v1437 = vmul.f32 %v1398, %v1434
        %v1438 = vmul.f32 %v1399, %v1434
        %v1439 = vmul.f32 %v1400, %v1434
        %v1440 = vmul.f32 %v1401, %v1434
        %v1441 = vmul.f32 %v1402, %v1434
        %v1442 = vmul.f32 %v1403, %v1434
        %v1443 = vmul.f32 %v1404, %v1434
        %v1444 = vmul.f32 %v1405, %v1434
        %v1445 = vmul.f32 %v1406, %v1434
        %v1446 = vmul.f32 %v1407, %v1434
        %v1447 = vmul.f32 %v1408, %v1434
        %v1448 = vmul.f32 %v1409, %v1434
        %v1449 = vmul.f32 %v1410, %v1434
        %v1450 = vmul.f32 %v1411, %v1434
        %v1451 = vmul.f32 %v1412, %v1434
        %v1452 = vmul.f32 %v1413, %v1434
        %v1453 = vmul.f32 %v1414, %v1434
        %v1454 = vmul.f32 %v1415, %v1434
        %v1455 = vmul.f32 %v1416, %v1434
        %v1456 = vmul.f32 %v1417, %v1434
        %v1457 = vmul.f32 %v1418, %v1434
        %v1458 = vmul.f32 %v1419, %v1434
        %v1459 = vmul.f32 %v1420, %v1434
        %v1460 = vmul.f32 %v1421, %v1434
        %v1461 = vmul.f32 %v1422, %v1434
        %v1462 = vmul.f32 %v1423, %v1434
        %v1463 = vmul.f32 %v1424, %v1434
        %v1464 = vmul.f32 %v1425, %v1434
        %v1465 = vmul.f32 %v1426, %v1434
        %v1466 = vmul.f32 %v1427, %v1434
        %v1467 = vmul.f32 %v1428, %v1434
        %v1468 = vld [vmem:[%s6] sm:$0x1]
        %v1470 = vlaneseq
        %v1471 = vshrl.u32 %v1470, 7
        %v1472 = vsub.s32 0, %v1471
        %v1473 = vrot.slane %v1468, %v1472
        %v1475 = vadd.f32 %v1436, %v1473
        %v1476 = vadd.f32 %v1437, %v1473
        %v1477 = vadd.f32 %v1438, %v1473
        %v1478 = vadd.f32 %v1439, %v1473
        %v1479 = vadd.f32 %v1440, %v1473
        %v1480 = vadd.f32 %v1441, %v1473
        %v1481 = vadd.f32 %v1442, %v1473
        %v1482 = vadd.f32 %v1443, %v1473
        %v1483 = vadd.f32 %v1444, %v1473
        %v1484 = vadd.f32 %v1445, %v1473
        %v1485 = vadd.f32 %v1446, %v1473
        %v1486 = vadd.f32 %v1447, %v1473
        %v1487 = vadd.f32 %v1448, %v1473
        %v1488 = vadd.f32 %v1449, %v1473
        %v1489 = vadd.f32 %v1450, %v1473
        %v1490 = vadd.f32 %v1451, %v1473
        %v1491 = vadd.f32 %v1452, %v1473
        %v1492 = vadd.f32 %v1453, %v1473
        %v1493 = vadd.f32 %v1454, %v1473
        %v1494 = vadd.f32 %v1455, %v1473
        %v1495 = vadd.f32 %v1456, %v1473
        %v1496 = vadd.f32 %v1457, %v1473
        %v1497 = vadd.f32 %v1458, %v1473
        %v1498 = vadd.f32 %v1459, %v1473
        %v1499 = vadd.f32 %v1460, %v1473
        %v1500 = vadd.f32 %v1461, %v1473
        %v1501 = vadd.f32 %v1462, %v1473
        %v1502 = vadd.f32 %v1463, %v1473
        %v1503 = vadd.f32 %v1464, %v1473
        %v1504 = vadd.f32 %v1465, %v1473
        %v1505 = vadd.f32 %v1466, %v1473
        %v1506 = vadd.f32 %v1467, %v1473
        %vm1507 = vcmp.gt.f32.partialorder %v1475, 0.0
        %vm1508 = vcmp.gt.f32.partialorder %v1476, 0.0
        %vm1509 = vcmp.gt.f32.partialorder %v1477, 0.0
        %vm1510 = vcmp.gt.f32.partialorder %v1478, 0.0
        %vm1511 = vcmp.gt.f32.partialorder %v1479, 0.0
        %vm1512 = vcmp.gt.f32.partialorder %v1480, 0.0
        %vm1513 = vcmp.gt.f32.partialorder %v1481, 0.0
        %vm1514 = vcmp.gt.f32.partialorder %v1482, 0.0
        %vm1515 = vcmp.gt.f32.partialorder %v1483, 0.0
        %vm1516 = vcmp.gt.f32.partialorder %v1484, 0.0
        %vm1517 = vcmp.gt.f32.partialorder %v1485, 0.0
        %vm1518 = vcmp.gt.f32.partialorder %v1486, 0.0
        %vm1519 = vcmp.gt.f32.partialorder %v1487, 0.0
        %vm1520 = vcmp.gt.f32.partialorder %v1488, 0.0
        %vm1521 = vcmp.gt.f32.partialorder %v1489, 0.0
        %vm1522 = vcmp.gt.f32.partialorder %v1490, 0.0
        %vm1523 = vcmp.gt.f32.partialorder %v1491, 0.0
        %vm1524 = vcmp.gt.f32.partialorder %v1492, 0.0
        %vm1525 = vcmp.gt.f32.partialorder %v1493, 0.0
        %vm1526 = vcmp.gt.f32.partialorder %v1494, 0.0
        %vm1527 = vcmp.gt.f32.partialorder %v1495, 0.0
        %vm1528 = vcmp.gt.f32.partialorder %v1496, 0.0
        %vm1529 = vcmp.gt.f32.partialorder %v1497, 0.0
        %vm1530 = vcmp.gt.f32.partialorder %v1498, 0.0
        %vm1531 = vcmp.gt.f32.partialorder %v1499, 0.0
        %vm1532 = vcmp.gt.f32.partialorder %v1500, 0.0
        %vm1533 = vcmp.gt.f32.partialorder %v1501, 0.0
        %vm1534 = vcmp.gt.f32.partialorder %v1502, 0.0
        %vm1535 = vcmp.gt.f32.partialorder %v1503, 0.0
        %vm1536 = vcmp.gt.f32.partialorder %v1504, 0.0
        %vm1537 = vcmp.gt.f32.partialorder %v1505, 0.0
        %vm1538 = vcmp.gt.f32.partialorder %v1506, 0.0
        %v1539 = vmul.f32 %v1475, 0.01
        %v1540 = vmul.f32 %v1476, 0.01
        %v1541 = vmul.f32 %v1477, 0.01
        %v1542 = vmul.f32 %v1478, 0.01
        %v1543 = vmul.f32 %v1479, 0.01
        %v1544 = vmul.f32 %v1480, 0.01
        %v1545 = vmul.f32 %v1481, 0.01
        %v1546 = vmul.f32 %v1482, 0.01
        %v1547 = vmul.f32 %v1483, 0.01
        %v1548 = vmul.f32 %v1484, 0.01
        %v1549 = vmul.f32 %v1485, 0.01
        %v1550 = vmul.f32 %v1486, 0.01
        %v1551 = vmul.f32 %v1487, 0.01
        %v1552 = vmul.f32 %v1488, 0.01
        %v1553 = vmul.f32 %v1489, 0.01
        %v1554 = vmul.f32 %v1490, 0.01
        %v1555 = vmul.f32 %v1491, 0.01
        %v1556 = vmul.f32 %v1492, 0.01
        %v1557 = vmul.f32 %v1493, 0.01
        %v1558 = vmul.f32 %v1494, 0.01
        %v1559 = vmul.f32 %v1495, 0.01
        %v1560 = vmul.f32 %v1496, 0.01
        %v1561 = vmul.f32 %v1497, 0.01
        %v1562 = vmul.f32 %v1498, 0.01
        %v1563 = vmul.f32 %v1499, 0.01
        %v1564 = vmul.f32 %v1500, 0.01
        %v1565 = vmul.f32 %v1501, 0.01
        %v1566 = vmul.f32 %v1502, 0.01
        %v1567 = vmul.f32 %v1503, 0.01
        %v1568 = vmul.f32 %v1504, 0.01
        %v1569 = vmul.f32 %v1505, 0.01
        %v1570 = vmul.f32 %v1506, 0.01
        %v1571 = vsel %vm1507, %v1475, %v1539
        %v1572 = vsel %vm1508, %v1476, %v1540
        %v1573 = vsel %vm1509, %v1477, %v1541
        %v1574 = vsel %vm1510, %v1478, %v1542
        %v1575 = vsel %vm1511, %v1479, %v1543
        %v1576 = vsel %vm1512, %v1480, %v1544
        %v1577 = vsel %vm1513, %v1481, %v1545
        %v1578 = vsel %vm1514, %v1482, %v1546
        %v1579 = vsel %vm1515, %v1483, %v1547
        %v1580 = vsel %vm1516, %v1484, %v1548
        %v1581 = vsel %vm1517, %v1485, %v1549
        %v1582 = vsel %vm1518, %v1486, %v1550
        %v1583 = vsel %vm1519, %v1487, %v1551
        %v1584 = vsel %vm1520, %v1488, %v1552
        %v1585 = vsel %vm1521, %v1489, %v1553
        %v1586 = vsel %vm1522, %v1490, %v1554
        %v1587 = vsel %vm1523, %v1491, %v1555
        %v1588 = vsel %vm1524, %v1492, %v1556
        %v1589 = vsel %vm1525, %v1493, %v1557
        %v1590 = vsel %vm1526, %v1494, %v1558
        %v1591 = vsel %vm1527, %v1495, %v1559
        %v1592 = vsel %vm1528, %v1496, %v1560
        %v1593 = vsel %vm1529, %v1497, %v1561
        %v1594 = vsel %vm1530, %v1498, %v1562
        %v1595 = vsel %vm1531, %v1499, %v1563
        %v1596 = vsel %vm1532, %v1500, %v1564
        %v1597 = vsel %vm1533, %v1501, %v1565
        %v1598 = vsel %vm1534, %v1502, %v1566
        %v1599 = vsel %vm1535, %v1503, %v1567
        %v1600 = vsel %vm1536, %v1504, %v1568
        %v1601 = vsel %vm1537, %v1505, %v1569
        %v1602 = vsel %vm1538, %v1506, %v1570
        %v1603 = vpack.c.bf16 %v1572, %v1571
        %v1604 = vpack.c.bf16 %v1574, %v1573
        %v1605 = vpack.c.bf16 %v1576, %v1575
        %v1606 = vpack.c.bf16 %v1578, %v1577
        %v1607 = vpack.c.bf16 %v1580, %v1579
        %v1608 = vpack.c.bf16 %v1582, %v1581
        %v1609 = vpack.c.bf16 %v1584, %v1583
        %v1610 = vpack.c.bf16 %v1586, %v1585
        %v1611 = vpack.c.bf16 %v1588, %v1587
        %v1612 = vpack.c.bf16 %v1590, %v1589
        %v1613 = vpack.c.bf16 %v1592, %v1591
        %v1614 = vpack.c.bf16 %v1594, %v1593
        %v1615 = vpack.c.bf16 %v1596, %v1595
        %v1616 = vpack.c.bf16 %v1598, %v1597
        %v1617 = vpack.c.bf16 %v1600, %v1599
        %v1618 = vpack.c.bf16 %v1602, %v1601
        %s1619 = scalar_lea.vmem %s3, 64
        %v1620 = vld [vmem:[%s1619] sm:$0xf]
        %v1621 = vld [vmem:[%s1619 + $0x4] sm:$0xf]
        %v1622 = vld [vmem:[%s1619 + $0x8] sm:$0xf]
        %v1623 = vld [vmem:[%s1619 + $0xc] sm:$0xf]
        %v1624 = vld [vmem:[%s1619 + $0x10] sm:$0xf]
        %v1625 = vld [vmem:[%s1619 + $0x14] sm:$0xf]
        %v1626 = vld [vmem:[%s1619 + $0x18] sm:$0xf]
        %v1627 = vld [vmem:[%s1619 + $0x1c] sm:$0xf]
        %v1628 = vld [vmem:[%s1619 + $0x20] sm:$0xf]
        %v1629 = vld [vmem:[%s1619 + $0x24] sm:$0xf]
        %v1630 = vld [vmem:[%s1619 + $0x28] sm:$0xf]
        %v1631 = vld [vmem:[%s1619 + $0x2c] sm:$0xf]
        %v1632 = vld [vmem:[%s1619 + $0x30] sm:$0xf]
        %v1633 = vld [vmem:[%s1619 + $0x34] sm:$0xf]
        %v1634 = vld [vmem:[%s1619 + $0x38] sm:$0xf]
        %v1635 = vld [vmem:[%s1619 + $0x3c] sm:$0xf]
        %s1636 = scalar_lea.vmem %s4, 1
        %v1637 = vld [vmem:[%s1636] sm:$0x1]
        %v1639 = vlaneseq
        %v1640 = vshrl.u32 %v1639, 7
        %v1641 = vsub.s32 0, %v1640
        %v1642 = vrot.slane %v1637, %v1641
        %v1660 = vunpack.c.l.b16 %v1620
        %v1661 = vunpack.c.l.b16 %v1621
        %v1662 = vunpack.c.l.b16 %v1622
        %v1663 = vunpack.c.l.b16 %v1623
        %v1664 = vunpack.c.l.b16 %v1624
        %v1665 = vunpack.c.l.b16 %v1625
        %v1666 = vunpack.c.l.b16 %v1626
        %v1667 = vunpack.c.l.b16 %v1627
        %v1668 = vunpack.c.l.b16 %v1628
        %v1669 = vunpack.c.l.b16 %v1629
        %v1670 = vunpack.c.l.b16 %v1630
        %v1671 = vunpack.c.l.b16 %v1631
        %v1672 = vunpack.c.l.b16 %v1632
        %v1673 = vunpack.c.l.b16 %v1633
        %v1674 = vunpack.c.l.b16 %v1634
        %v1675 = vunpack.c.l.b16 %v1635
        %v1676 = vpack.c.b16 %v1661, %v1660
        %v1677 = vpack.c.b16 %v1663, %v1662
        %v1678 = vpack.c.b16 %v1665, %v1664
        %v1679 = vpack.c.b16 %v1667, %v1666
        %v1680 = vpack.c.b16 %v1669, %v1668
        %v1681 = vpack.c.b16 %v1671, %v1670
        %v1682 = vpack.c.b16 %v1673, %v1672
        %v1683 = vpack.c.b16 %v1675, %v1674
        %1692 = vmatprep.subr.bf16.mxu0 0
        %1693 = vmatpush1.bf16.msra.mxu0 %v1676
        %1694 = vmatprep.subr.bf16.mxu0 0
        %1695 = vmatpush1.bf16.msra.mxu0 %v1677
        %1696 = vmatprep.subr.bf16.mxu0 0
        %1697 = vmatpush1.bf16.msra.mxu0 %v1678
        %1698 = vmatprep.subr.bf16.mxu0 0
        %1699 = vmatpush1.bf16.msra.mxu0 %v1679
        %1700 = vmatprep.subr.bf16.mxu0 0
        %1701 = vmatpush1.bf16.msra.mxu0 %v1680
        %1702 = vmatprep.subr.bf16.mxu0 0
        %1703 = vmatpush1.bf16.msra.mxu0 %v1681
        %1704 = vmatprep.subr.bf16.mxu0 0
        %1705 = vmatpush1.bf16.msra.mxu0 %v1682
        %1706 = vmatprep.subr.bf16.mxu0 0
        %1707 = vmatpush1.bf16.msra.mxu0 %v1683
        %1708 = vmatprep.subr.bf16.mxu0 0
        %1709 = vmatpush1.bf16.msra.mxu0 0
        %1710 = vmatprep.subr.bf16.mxu0 0
        %1711 = vmatpush1.bf16.msra.mxu0 0
        %1712 = vmatprep.subr.bf16.mxu0 0
        %1713 = vmatpush1.bf16.msra.mxu0 0
        %1714 = vmatprep.subr.bf16.mxu0 0
        %1715 = vmatpush1.bf16.msra.mxu0 0
        %1716 = vmatprep.subr.bf16.mxu0 0
        %1717 = vmatpush1.bf16.msra.mxu0 0
        %1718 = vmatprep.subr.bf16.mxu0 0
        %1719 = vmatpush1.bf16.msra.mxu0 0
        %1720 = vmatprep.subr.bf16.mxu0 0
        %1721 = vmatpush1.bf16.msra.mxu0 0
        %1722 = vmatprep.subr.bf16.mxu0 0
        %1723 = vmatpush1.bf16.msra.mxu0 0
        %1724 = vmatprep.mubr.bf16.mxu0 0
        %1725 = vmatmul.mubr.bf16.gmra.mrb[0].mxu0 %v1603
        %v1726 = vpop.f32.mrb[0].mxu0
        %v1727 = vadd.f32 %v1642, %v1726
        %v1728 = vpop.f32.mrb[0].mxu0
        %v1729 = vpop.f32.mrb[0].mxu0
        %v1730 = vadd.f32 %v1642, %v1729
        %v1731 = vpop.f32.mrb[0].mxu0
        %1732 = vmatprep.mubr.bf16.mxu0 0
        %1733 = vmatmul.mubr.bf16.gmra.mrb[0].mxu0 %v1604
        %v1734 = vpop.f32.mrb[0].mxu0
        %v1735 = vadd.f32 %v1642, %v1734
        %v1736 = vpop.f32.mrb[0].mxu0
        %v1737 = vpop.f32.mrb[0].mxu0
        %v1738 = vadd.f32 %v1642, %v1737
        %v1739 = vpop.f32.mrb[0].mxu0
        %1740 = vmatprep.mubr.bf16.mxu0 0
        %1741 = vmatmul.mubr.bf16.gmra.mrb[0].mxu0 %v1605
        %v1742 = vpop.f32.mrb[0].mxu0
        %v1743 = vadd.f32 %v1642, %v1742
        %v1744 = vpop.f32.mrb[0].mxu0
        %v1745 = vpop.f32.mrb[0].mxu0
        %v1746 = vadd.f32 %v1642, %v1745
        %v1747 = vpop.f32.mrb[0].mxu0
        %1748 = vmatprep.mubr.bf16.mxu0 0
        %1749 = vmatmul.mubr.bf16.gmra.mrb[0].mxu0 %v1606
        %v1750 = vpop.f32.mrb[0].mxu0
        %v1751 = vadd.f32 %v1642, %v1750
        %v1752 = vpop.f32.mrb[0].mxu0
        %v1753 = vpop.f32.mrb[0].mxu0
        %v1754 = vadd.f32 %v1642, %v1753
        %v1755 = vpop.f32.mrb[0].mxu0
        %1756 = vmatprep.mubr.bf16.mxu0 0
        %1757 = vmatmul.mubr.bf16.gmra.mrb[0].mxu0 %v1607
        %v1758 = vpop.f32.mrb[0].mxu0
        %v1759 = vadd.f32 %v1642, %v1758
        %v1760 = vpop.f32.mrb[0].mxu0
        %v1761 = vpop.f32.mrb[0].mxu0
        %v1762 = vadd.f32 %v1642, %v1761
        %v1763 = vpop.f32.mrb[0].mxu0
        %1764 = vmatprep.mubr.bf16.mxu0 0
        %1765 = vmatmul.mubr.bf16.gmra.mrb[0].mxu0 %v1608
        %v1766 = vpop.f32.mrb[0].mxu0
        %v1767 = vadd.f32 %v1642, %v1766
        %v1768 = vpop.f32.mrb[0].mxu0
        %v1769 = vpop.f32.mrb[0].mxu0
        %v1770 = vadd.f32 %v1642, %v1769
        %v1771 = vpop.f32.mrb[0].mxu0
        %1772 = vmatprep.mubr.bf16.mxu0 0
        %1773 = vmatmul.mubr.bf16.gmra.mrb[0].mxu0 %v1609
        %v1774 = vpop.f32.mrb[0].mxu0
        %v1775 = vadd.f32 %v1642, %v1774
        %v1776 = vpop.f32.mrb[0].mxu0
        %v1777 = vpop.f32.mrb[0].mxu0
        %v1778 = vadd.f32 %v1642, %v1777
        %v1779 = vpop.f32.mrb[0].mxu0
        %1780 = vmatprep.mubr.bf16.mxu0 0
        %1781 = vmatmul.mubr.bf16.gmra.mrb[0].mxu0 %v1610
        %v1782 = vpop.f32.mrb[0].mxu0
        %v1783 = vadd.f32 %v1642, %v1782
        %v1784 = vpop.f32.mrb[0].mxu0
        %v1785 = vpop.f32.mrb[0].mxu0
        %v1786 = vadd.f32 %v1642, %v1785
        %v1787 = vpop.f32.mrb[0].mxu0
        %1788 = vmatprep.mubr.bf16.mxu0 0
        %1789 = vmatmul.mubr.bf16.gmra.mrb[0].mxu0 %v1611
        %v1790 = vpop.f32.mrb[0].mxu0
        %v1791 = vadd.f32 %v1642, %v1790
        %v1792 = vpop.f32.mrb[0].mxu0
        %v1793 = vpop.f32.mrb[0].mxu0
        %v1794 = vadd.f32 %v1642, %v1793
        %v1795 = vpop.f32.mrb[0].mxu0
        %1796 = vmatprep.mubr.bf16.mxu0 0
        %1797 = vmatmul.mubr.bf16.gmra.mrb[0].mxu0 %v1612
        %v1798 = vpop.f32.mrb[0].mxu0
        %v1799 = vadd.f32 %v1642, %v1798
        %v1800 = vpop.f32.mrb[0].mxu0
        %v1801 = vpop.f32.mrb[0].mxu0
        %v1802 = vadd.f32 %v1642, %v1801
        %v1803 = vpop.f32.mrb[0].mxu0
        %1804 = vmatprep.mubr.bf16.mxu0 0
        %1805 = vmatmul.mubr.bf16.gmra.mrb[0].mxu0 %v1613
        %v1806 = vpop.f32.mrb[0].mxu0
        %v1807 = vadd.f32 %v1642, %v1806
        %v1808 = vpop.f32.mrb[0].mxu0
        %v1809 = vpop.f32.mrb[0].mxu0
        %v1810 = vadd.f32 %v1642, %v1809
        %v1811 = vpop.f32.mrb[0].mxu0
        %1812 = vmatprep.mubr.bf16.mxu0 0
        %1813 = vmatmul.mubr.bf16.gmra.mrb[0].mxu0 %v1614
        %v1814 = vpop.f32.mrb[0].mxu0
        %v1815 = vadd.f32 %v1642, %v1814
        %v1816 = vpop.f32.mrb[0].mxu0
        %v1817 = vpop.f32.mrb[0].mxu0
        %v1818 = vadd.f32 %v1642, %v1817
        %v1819 = vpop.f32.mrb[0].mxu0
        %1820 = vmatprep.mubr.bf16.mxu0 0
        %1821 = vmatmul.mubr.bf16.gmra.mrb[0].mxu0 %v1615
        %v1822 = vpop.f32.mrb[0].mxu0
        %v1823 = vadd.f32 %v1642, %v1822
        %v1824 = vpop.f32.mrb[0].mxu0
        %v1825 = vpop.f32.mrb[0].mxu0
        %v1826 = vadd.f32 %v1642, %v1825
        %v1827 = vpop.f32.mrb[0].mxu0
        %1828 = vmatprep.mubr.bf16.mxu0 0
        %1829 = vmatmul.mubr.bf16.gmra.mrb[0].mxu0 %v1616
        %v1830 = vpop.f32.mrb[0].mxu0
        %v1831 = vadd.f32 %v1642, %v1830
        %v1832 = vpop.f32.mrb[0].mxu0
        %v1833 = vpop.f32.mrb[0].mxu0
        %v1834 = vadd.f32 %v1642, %v1833
        %v1835 = vpop.f32.mrb[0].mxu0
        %1836 = vmatprep.mubr.bf16.mxu0 0
        %1837 = vmatmul.mubr.bf16.gmra.mrb[0].mxu0 %v1617
        %v1838 = vpop.f32.mrb[0].mxu0
        %v1839 = vadd.f32 %v1642, %v1838
        %v1840 = vpop.f32.mrb[0].mxu0
        %v1841 = vpop.f32.mrb[0].mxu0
        %v1842 = vadd.f32 %v1642, %v1841
        %v1843 = vpop.f32.mrb[0].mxu0
        %1844 = vmatprep.mubr.bf16.mxu0 0
        %1845 = vmatmul.mubr.bf16.gmra.mrb[0].mxu0 %v1618
        %v1846 = vpop.f32.mrb[0].mxu0
        %v1847 = vadd.f32 %v1642, %v1846
        %v1848 = vpop.f32.mrb[0].mxu0
        %v1849 = vpop.f32.mrb[0].mxu0
        %v1850 = vadd.f32 %v1642, %v1849
        %v1851 = vpop.f32.mrb[0].mxu0
        %1852 = vdwg.mxu0
        %1853 = vadd.xlane.f32.xlu0 %v1727
        %v1854 = vpop.xlane.xlu0 %1853
        %1855 = vadd.xlane.f32.xlu0 %v1730
        %v1856 = vpop.xlane.xlu0 %1855
        %1857 = vadd.xlane.f32.xlu0 %v1735
        %v1858 = vpop.xlane.xlu0 %1857
        %1859 = vadd.xlane.f32.xlu0 %v1738
        %v1860 = vpop.xlane.xlu0 %1859
        %1861 = vadd.xlane.f32.xlu0 %v1743
        %v1862 = vpop.xlane.xlu0 %1861
        %1863 = vadd.xlane.f32.xlu0 %v1746
        %v1864 = vpop.xlane.xlu0 %1863
        %1865 = vadd.xlane.f32.xlu0 %v1751
        %v1866 = vpop.xlane.xlu0 %1865
        %1867 = vadd.xlane.f32.xlu0 %v1754
        %v1868 = vpop.xlane.xlu0 %1867
        %1869 = vadd.xlane.f32.xlu0 %v1759
        %v1870 = vpop.xlane.xlu0 %1869
        %1871 = vadd.xlane.f32.xlu0 %v1762
        %v1872 = vpop.xlane.xlu0 %1871
        %1873 = vadd.xlane.f32.xlu0 %v1767
        %v1874 = vpop.xlane.xlu0 %1873
        %1875 = vadd.xlane.f32.xlu0 %v1770
        %v1876 = vpop.xlane.xlu0 %1875
        %1877 = vadd.xlane.f32.xlu0 %v1775
        %v1878 = vpop.xlane.xlu0 %1877
        %1879 = vadd.xlane.f32.xlu0 %v1778
        %v1880 = vpop.xlane.xlu0 %1879
        %1881 = vadd.xlane.f32.xlu0 %v1783
        %v1882 = vpop.xlane.xlu0 %1881
        %1883 = vadd.xlane.f32.xlu0 %v1786
        %v1884 = vpop.xlane.xlu0 %1883
        %1885 = vadd.xlane.f32.xlu0 %v1791
        %v1886 = vpop.xlane.xlu0 %1885
        %1887 = vadd.xlane.f32.xlu0 %v1794
        %v1888 = vpop.xlane.xlu0 %1887
        %1889 = vadd.xlane.f32.xlu0 %v1799
        %v1890 = vpop.xlane.xlu0 %1889
        %1891 = vadd.xlane.f32.xlu0 %v1802
        %v1892 = vpop.xlane.xlu0 %1891
        %1893 = vadd.xlane.f32.xlu0 %v1807
        %v1894 = vpop.xlane.xlu0 %1893
        %1895 = vadd.xlane.f32.xlu0 %v1810
        %v1896 = vpop.xlane.xlu0 %1895
        %1897 = vadd.xlane.f32.xlu0 %v1815
        %v1898 = vpop.xlane.xlu0 %1897
        %1899 = vadd.xlane.f32.xlu0 %v1818
        %v1900 = vpop.xlane.xlu0 %1899
        %1901 = vadd.xlane.f32.xlu0 %v1823
        %v1902 = vpop.xlane.xlu0 %1901
        %1903 = vadd.xlane.f32.xlu0 %v1826
        %v1904 = vpop.xlane.xlu0 %1903
        %1905 = vadd.xlane.f32.xlu0 %v1831
        %v1906 = vpop.xlane.xlu0 %1905
        %1907 = vadd.xlane.f32.xlu0 %v1834
        %v1908 = vpop.xlane.xlu0 %1907
        %1909 = vadd.xlane.f32.xlu0 %v1839
        %v1910 = vpop.xlane.xlu0 %1909
        %1911 = vadd.xlane.f32.xlu0 %v1842
        %v1912 = vpop.xlane.xlu0 %1911
        %1913 = vadd.xlane.f32.xlu0 %v1847
        %v1914 = vpop.xlane.xlu0 %1913
        %1915 = vadd.xlane.f32.xlu0 %v1850
        %v1916 = vpop.xlane.xlu0 %1915
        %v1917 = vmul.f32 %v1727, %v1727
        %v1918 = vmul.f32 %v1730, %v1730
        %v1919 = vmul.f32 %v1735, %v1735
        %v1920 = vmul.f32 %v1738, %v1738
        %v1921 = vmul.f32 %v1743, %v1743
        %v1922 = vmul.f32 %v1746, %v1746
        %v1923 = vmul.f32 %v1751, %v1751
        %v1924 = vmul.f32 %v1754, %v1754
        %v1925 = vmul.f32 %v1759, %v1759
        %v1926 = vmul.f32 %v1762, %v1762
        %v1927 = vmul.f32 %v1767, %v1767
        %v1928 = vmul.f32 %v1770, %v1770
        %v1929 = vmul.f32 %v1775, %v1775
        %v1930 = vmul.f32 %v1778, %v1778
        %v1931 = vmul.f32 %v1783, %v1783
        %v1932 = vmul.f32 %v1786, %v1786
        %v1933 = vmul.f32 %v1791, %v1791
        %v1934 = vmul.f32 %v1794, %v1794
        %v1935 = vmul.f32 %v1799, %v1799
        %v1936 = vmul.f32 %v1802, %v1802
        %v1937 = vmul.f32 %v1807, %v1807
        %v1938 = vmul.f32 %v1810, %v1810
        %v1939 = vmul.f32 %v1815, %v1815
        %v1940 = vmul.f32 %v1818, %v1818
        %v1941 = vmul.f32 %v1823, %v1823
        %v1942 = vmul.f32 %v1826, %v1826
        %v1943 = vmul.f32 %v1831, %v1831
        %v1944 = vmul.f32 %v1834, %v1834
        %v1945 = vmul.f32 %v1839, %v1839
        %v1946 = vmul.f32 %v1842, %v1842
        %v1947 = vmul.f32 %v1847, %v1847
        %v1948 = vmul.f32 %v1850, %v1850
        %1949 = vadd.xlane.f32.xlu0 %v1917
        %v1950 = vpop.xlane.xlu0 %1949
        %1951 = vadd.xlane.f32.xlu0 %v1918
        %v1952 = vpop.xlane.xlu0 %1951
        %1953 = vadd.xlane.f32.xlu0 %v1919
        %v1954 = vpop.xlane.xlu0 %1953
        %1955 = vadd.xlane.f32.xlu0 %v1920
        %v1956 = vpop.xlane.xlu0 %1955
        %1957 = vadd.xlane.f32.xlu0 %v1921
        %v1958 = vpop.xlane.xlu0 %1957
        %1959 = vadd.xlane.f32.xlu0 %v1922
        %v1960 = vpop.xlane.xlu0 %1959
        %1961 = vadd.xlane.f32.xlu0 %v1923
        %v1962 = vpop.xlane.xlu0 %1961
        %1963 = vadd.xlane.f32.xlu0 %v1924
        %v1964 = vpop.xlane.xlu0 %1963
        %1965 = vadd.xlane.f32.xlu0 %v1925
        %v1966 = vpop.xlane.xlu0 %1965
        %1967 = vadd.xlane.f32.xlu0 %v1926
        %v1968 = vpop.xlane.xlu0 %1967
        %1969 = vadd.xlane.f32.xlu0 %v1927
        %v1970 = vpop.xlane.xlu0 %1969
        %1971 = vadd.xlane.f32.xlu0 %v1928
        %v1972 = vpop.xlane.xlu0 %1971
        %1973 = vadd.xlane.f32.xlu0 %v1929
        %v1974 = vpop.xlane.xlu0 %1973
        %1975 = vadd.xlane.f32.xlu0 %v1930
        %v1976 = vpop.xlane.xlu0 %1975
        %1977 = vadd.xlane.f32.xlu0 %v1931
        %v1978 = vpop.xlane.xlu0 %1977
        %1979 = vadd.xlane.f32.xlu0 %v1932
        %v1980 = vpop.xlane.xlu0 %1979
        %1981 = vadd.xlane.f32.xlu0 %v1933
        %v1982 = vpop.xlane.xlu0 %1981
        %1983 = vadd.xlane.f32.xlu0 %v1934
        %v1984 = vpop.xlane.xlu0 %1983
        %1985 = vadd.xlane.f32.xlu0 %v1935
        %v1986 = vpop.xlane.xlu0 %1985
        %1987 = vadd.xlane.f32.xlu0 %v1936
        %v1988 = vpop.xlane.xlu0 %1987
        %1989 = vadd.xlane.f32.xlu0 %v1937
        %v1990 = vpop.xlane.xlu0 %1989
        %1991 = vadd.xlane.f32.xlu0 %v1938
        %v1992 = vpop.xlane.xlu0 %1991
        %1993 = vadd.xlane.f32.xlu0 %v1939
        %v1994 = vpop.xlane.xlu0 %1993
        %1995 = vadd.xlane.f32.xlu0 %v1940
        %v1996 = vpop.xlane.xlu0 %1995
        %1997 = vadd.xlane.f32.xlu0 %v1941
        %v1998 = vpop.xlane.xlu0 %1997
        %1999 = vadd.xlane.f32.xlu0 %v1942
        %v2000 = vpop.xlane.xlu0 %1999
        %2001 = vadd.xlane.f32.xlu0 %v1943
        %v2002 = vpop.xlane.xlu0 %2001
        %2003 = vadd.xlane.f32.xlu0 %v1944
        %v2004 = vpop.xlane.xlu0 %2003
        %2005 = vadd.xlane.f32.xlu0 %v1945
        %v2006 = vpop.xlane.xlu0 %2005
        %2007 = vadd.xlane.f32.xlu0 %v1946
        %v2008 = vpop.xlane.xlu0 %2007
        %2009 = vadd.xlane.f32.xlu0 %v1947
        %v2010 = vpop.xlane.xlu0 %2009
        %2011 = vadd.xlane.f32.xlu0 %v1948
        %v2012 = vpop.xlane.xlu0 %2011
        %v2013 = vmul.f32 %v1854, 0.03125
        %v2014 = vmul.f32 %v1856, 0.03125
        %v2015 = vmul.f32 %v1858, 0.03125
        %v2016 = vmul.f32 %v1860, 0.03125
        %v2017 = vmul.f32 %v1862, 0.03125
        %v2018 = vmul.f32 %v1864, 0.03125
        %v2019 = vmul.f32 %v1866, 0.03125
        %v2020 = vmul.f32 %v1868, 0.03125
        %v2021 = vmul.f32 %v1870, 0.03125
        %v2022 = vmul.f32 %v1872, 0.03125
        %v2023 = vmul.f32 %v1874, 0.03125
        %v2024 = vmul.f32 %v1876, 0.03125
        %v2025 = vmul.f32 %v1878, 0.03125
        %v2026 = vmul.f32 %v1880, 0.03125
        %v2027 = vmul.f32 %v1882, 0.03125
        %v2028 = vmul.f32 %v1884, 0.03125
        %v2029 = vmul.f32 %v1886, 0.03125
        %v2030 = vmul.f32 %v1888, 0.03125
        %v2031 = vmul.f32 %v1890, 0.03125
        %v2032 = vmul.f32 %v1892, 0.03125
        %v2033 = vmul.f32 %v1894, 0.03125
        %v2034 = vmul.f32 %v1896, 0.03125
        %v2035 = vmul.f32 %v1898, 0.03125
        %v2036 = vmul.f32 %v1900, 0.03125
        %v2037 = vmul.f32 %v1902, 0.03125
        %v2038 = vmul.f32 %v1904, 0.03125
        %v2039 = vmul.f32 %v1906, 0.03125
        %v2040 = vmul.f32 %v1908, 0.03125
        %v2041 = vmul.f32 %v1910, 0.03125
        %v2042 = vmul.f32 %v1912, 0.03125
        %v2043 = vmul.f32 %v1914, 0.03125
        %v2044 = vmul.f32 %v1916, 0.03125
        %v2045 = vmul.f32 %v1950, 0.03125
        %v2046 = vmul.f32 %v1952, 0.03125
        %v2047 = vmul.f32 %v1954, 0.03125
        %v2048 = vmul.f32 %v1956, 0.03125
        %v2049 = vmul.f32 %v1958, 0.03125
        %v2050 = vmul.f32 %v1960, 0.03125
        %v2051 = vmul.f32 %v1962, 0.03125
        %v2052 = vmul.f32 %v1964, 0.03125
        %v2053 = vmul.f32 %v1966, 0.03125
        %v2054 = vmul.f32 %v1968, 0.03125
        %v2055 = vmul.f32 %v1970, 0.03125
        %v2056 = vmul.f32 %v1972, 0.03125
        %v2057 = vmul.f32 %v1974, 0.03125
        %v2058 = vmul.f32 %v1976, 0.03125
        %v2059 = vmul.f32 %v1978, 0.03125
        %v2060 = vmul.f32 %v1980, 0.03125
        %v2061 = vmul.f32 %v1982, 0.03125
        %v2062 = vmul.f32 %v1984, 0.03125
        %v2063 = vmul.f32 %v1986, 0.03125
        %v2064 = vmul.f32 %v1988, 0.03125
        %v2065 = vmul.f32 %v1990, 0.03125
        %v2066 = vmul.f32 %v1992, 0.03125
        %v2067 = vmul.f32 %v1994, 0.03125
        %v2068 = vmul.f32 %v1996, 0.03125
        %v2069 = vmul.f32 %v1998, 0.03125
        %v2070 = vmul.f32 %v2000, 0.03125
        %v2071 = vmul.f32 %v2002, 0.03125
        %v2072 = vmul.f32 %v2004, 0.03125
        %v2073 = vmul.f32 %v2006, 0.03125
        %v2074 = vmul.f32 %v2008, 0.03125
        %v2075 = vmul.f32 %v2010, 0.03125
        %v2076 = vmul.f32 %v2012, 0.03125
        %v2077 = vmul.f32 %v2013, %v2013
        %v2078 = vmul.f32 %v2014, %v2014
        %v2079 = vmul.f32 %v2015, %v2015
        %v2080 = vmul.f32 %v2016, %v2016
        %v2081 = vmul.f32 %v2017, %v2017
        %v2082 = vmul.f32 %v2018, %v2018
        %v2083 = vmul.f32 %v2019, %v2019
        %v2084 = vmul.f32 %v2020, %v2020
        %v2085 = vmul.f32 %v2021, %v2021
        %v2086 = vmul.f32 %v2022, %v2022
        %v2087 = vmul.f32 %v2023, %v2023
        %v2088 = vmul.f32 %v2024, %v2024
        %v2089 = vmul.f32 %v2025, %v2025
        %v2090 = vmul.f32 %v2026, %v2026
        %v2091 = vmul.f32 %v2027, %v2027
        %v2092 = vmul.f32 %v2028, %v2028
        %v2093 = vmul.f32 %v2029, %v2029
        %v2094 = vmul.f32 %v2030, %v2030
        %v2095 = vmul.f32 %v2031, %v2031
        %v2096 = vmul.f32 %v2032, %v2032
        %v2097 = vmul.f32 %v2033, %v2033
        %v2098 = vmul.f32 %v2034, %v2034
        %v2099 = vmul.f32 %v2035, %v2035
        %v2100 = vmul.f32 %v2036, %v2036
        %v2101 = vmul.f32 %v2037, %v2037
        %v2102 = vmul.f32 %v2038, %v2038
        %v2103 = vmul.f32 %v2039, %v2039
        %v2104 = vmul.f32 %v2040, %v2040
        %v2105 = vmul.f32 %v2041, %v2041
        %v2106 = vmul.f32 %v2042, %v2042
        %v2107 = vmul.f32 %v2043, %v2043
        %v2108 = vmul.f32 %v2044, %v2044
        %v2109 = vsub.f32 %v2045, %v2077
        %v2110 = vsub.f32 %v2046, %v2078
        %v2111 = vsub.f32 %v2047, %v2079
        %v2112 = vsub.f32 %v2048, %v2080
        %v2113 = vsub.f32 %v2049, %v2081
        %v2114 = vsub.f32 %v2050, %v2082
        %v2115 = vsub.f32 %v2051, %v2083
        %v2116 = vsub.f32 %v2052, %v2084
        %v2117 = vsub.f32 %v2053, %v2085
        %v2118 = vsub.f32 %v2054, %v2086
        %v2119 = vsub.f32 %v2055, %v2087
        %v2120 = vsub.f32 %v2056, %v2088
        %v2121 = vsub.f32 %v2057, %v2089
        %v2122 = vsub.f32 %v2058, %v2090
        %v2123 = vsub.f32 %v2059, %v2091
        %v2124 = vsub.f32 %v2060, %v2092
        %v2125 = vsub.f32 %v2061, %v2093
        %v2126 = vsub.f32 %v2062, %v2094
        %v2127 = vsub.f32 %v2063, %v2095
        %v2128 = vsub.f32 %v2064, %v2096
        %v2129 = vsub.f32 %v2065, %v2097
        %v2130 = vsub.f32 %v2066, %v2098
        %v2131 = vsub.f32 %v2067, %v2099
        %v2132 = vsub.f32 %v2068, %v2100
        %v2133 = vsub.f32 %v2069, %v2101
        %v2134 = vsub.f32 %v2070, %v2102
        %v2135 = vsub.f32 %v2071, %v2103
        %v2136 = vsub.f32 %v2072, %v2104
        %v2137 = vsub.f32 %v2073, %v2105
        %v2138 = vsub.f32 %v2074, %v2106
        %v2139 = vsub.f32 %v2075, %v2107
        %v2140 = vsub.f32 %v2076, %v2108
        %v2141 = vsub.f32 %v1727, %v2013
        %v2142 = vsub.f32 %v1730, %v2014
        %v2143 = vsub.f32 %v1735, %v2015
        %v2144 = vsub.f32 %v1738, %v2016
        %v2145 = vsub.f32 %v1743, %v2017
        %v2146 = vsub.f32 %v1746, %v2018
        %v2147 = vsub.f32 %v1751, %v2019
        %v2148 = vsub.f32 %v1754, %v2020
        %v2149 = vsub.f32 %v1759, %v2021
        %v2150 = vsub.f32 %v1762, %v2022
        %v2151 = vsub.f32 %v1767, %v2023
        %v2152 = vsub.f32 %v1770, %v2024
        %v2153 = vsub.f32 %v1775, %v2025
        %v2154 = vsub.f32 %v1778, %v2026
        %v2155 = vsub.f32 %v1783, %v2027
        %v2156 = vsub.f32 %v1786, %v2028
        %v2157 = vsub.f32 %v1791, %v2029
        %v2158 = vsub.f32 %v1794, %v2030
        %v2159 = vsub.f32 %v1799, %v2031
        %v2160 = vsub.f32 %v1802, %v2032
        %v2161 = vsub.f32 %v1807, %v2033
        %v2162 = vsub.f32 %v1810, %v2034
        %v2163 = vsub.f32 %v1815, %v2035
        %v2164 = vsub.f32 %v1818, %v2036
        %v2165 = vsub.f32 %v1823, %v2037
        %v2166 = vsub.f32 %v1826, %v2038
        %v2167 = vsub.f32 %v1831, %v2039
        %v2168 = vsub.f32 %v1834, %v2040
        %v2169 = vsub.f32 %v1839, %v2041
        %v2170 = vsub.f32 %v1842, %v2042
        %v2171 = vsub.f32 %v1847, %v2043
        %v2172 = vsub.f32 %v1850, %v2044
        %v2173 = vadd.f32 %v2109, 1e-05
        %v2174 = vadd.f32 %v2110, 1e-05
        %v2175 = vadd.f32 %v2111, 1e-05
        %v2176 = vadd.f32 %v2112, 1e-05
        %v2177 = vadd.f32 %v2113, 1e-05
        %v2178 = vadd.f32 %v2114, 1e-05
        %v2179 = vadd.f32 %v2115, 1e-05
        %v2180 = vadd.f32 %v2116, 1e-05
        %v2181 = vadd.f32 %v2117, 1e-05
        %v2182 = vadd.f32 %v2118, 1e-05
        %v2183 = vadd.f32 %v2119, 1e-05
        %v2184 = vadd.f32 %v2120, 1e-05
        %v2185 = vadd.f32 %v2121, 1e-05
        %v2186 = vadd.f32 %v2122, 1e-05
        %v2187 = vadd.f32 %v2123, 1e-05
        %v2188 = vadd.f32 %v2124, 1e-05
        %v2189 = vadd.f32 %v2125, 1e-05
        %v2190 = vadd.f32 %v2126, 1e-05
        %v2191 = vadd.f32 %v2127, 1e-05
        %v2192 = vadd.f32 %v2128, 1e-05
        %v2193 = vadd.f32 %v2129, 1e-05
        %v2194 = vadd.f32 %v2130, 1e-05
        %v2195 = vadd.f32 %v2131, 1e-05
        %v2196 = vadd.f32 %v2132, 1e-05
        %v2197 = vadd.f32 %v2133, 1e-05
        %v2198 = vadd.f32 %v2134, 1e-05
        %v2199 = vadd.f32 %v2135, 1e-05
        %v2200 = vadd.f32 %v2136, 1e-05
        %v2201 = vadd.f32 %v2137, 1e-05
        %v2202 = vadd.f32 %v2138, 1e-05
        %v2203 = vadd.f32 %v2139, 1e-05
        %v2204 = vadd.f32 %v2140, 1e-05
        %v2205 = vrsqrt.pop %v2173
        %v2206 = vrsqrt.pop %v2174
        %v2207 = vrsqrt.pop %v2175
        %v2208 = vrsqrt.pop %v2176
        %v2209 = vrsqrt.pop %v2177
        %v2210 = vrsqrt.pop %v2178
        %v2211 = vrsqrt.pop %v2179
        %v2212 = vrsqrt.pop %v2180
        %v2213 = vrsqrt.pop %v2181
        %v2214 = vrsqrt.pop %v2182
        %v2215 = vrsqrt.pop %v2183
        %v2216 = vrsqrt.pop %v2184
        %v2217 = vrsqrt.pop %v2185
        %v2218 = vrsqrt.pop %v2186
        %v2219 = vrsqrt.pop %v2187
        %v2220 = vrsqrt.pop %v2188
        %v2221 = vrsqrt.pop %v2189
        %v2222 = vrsqrt.pop %v2190
        %v2223 = vrsqrt.pop %v2191
        %v2224 = vrsqrt.pop %v2192
        %v2225 = vrsqrt.pop %v2193
        %v2226 = vrsqrt.pop %v2194
        %v2227 = vrsqrt.pop %v2195
        %v2228 = vrsqrt.pop %v2196
        %v2229 = vrsqrt.pop %v2197
        %v2230 = vrsqrt.pop %v2198
        %v2231 = vrsqrt.pop %v2199
        %v2232 = vrsqrt.pop %v2200
        %v2233 = vrsqrt.pop %v2201
        %v2234 = vrsqrt.pop %v2202
        %v2235 = vrsqrt.pop %v2203
        %v2236 = vrsqrt.pop %v2204
        %v2237 = vmul.f32 %v2141, %v2205
        %v2238 = vmul.f32 %v2142, %v2206
        %v2239 = vmul.f32 %v2143, %v2207
        %v2240 = vmul.f32 %v2144, %v2208
        %v2241 = vmul.f32 %v2145, %v2209
        %v2242 = vmul.f32 %v2146, %v2210
        %v2243 = vmul.f32 %v2147, %v2211
        %v2244 = vmul.f32 %v2148, %v2212
        %v2245 = vmul.f32 %v2149, %v2213
        %v2246 = vmul.f32 %v2150, %v2214
        %v2247 = vmul.f32 %v2151, %v2215
        %v2248 = vmul.f32 %v2152, %v2216
        %v2249 = vmul.f32 %v2153, %v2217
        %v2250 = vmul.f32 %v2154, %v2218
        %v2251 = vmul.f32 %v2155, %v2219
        %v2252 = vmul.f32 %v2156, %v2220
        %v2253 = vmul.f32 %v2157, %v2221
        %v2254 = vmul.f32 %v2158, %v2222
        %v2255 = vmul.f32 %v2159, %v2223
        %v2256 = vmul.f32 %v2160, %v2224
        %v2257 = vmul.f32 %v2161, %v2225
        %v2258 = vmul.f32 %v2162, %v2226
        %v2259 = vmul.f32 %v2163, %v2227
        %v2260 = vmul.f32 %v2164, %v2228
        %v2261 = vmul.f32 %v2165, %v2229
        %v2262 = vmul.f32 %v2166, %v2230
        %v2263 = vmul.f32 %v2167, %v2231
        %v2264 = vmul.f32 %v2168, %v2232
        %v2265 = vmul.f32 %v2169, %v2233
        %v2266 = vmul.f32 %v2170, %v2234
        %v2267 = vmul.f32 %v2171, %v2235
        %v2268 = vmul.f32 %v2172, %v2236
        %s2269 = scalar_lea.vmem %s5, 1
        %v2270 = vld [vmem:[%s2269] sm:$0x1]
        %v2272 = vlaneseq
        %v2273 = vshrl.u32 %v2272, 7
        %v2274 = vsub.s32 0, %v2273
        %v2275 = vrot.slane %v2270, %v2274
        %v2277 = vmul.f32 %v2237, %v2275
        %v2278 = vmul.f32 %v2238, %v2275
        %v2279 = vmul.f32 %v2239, %v2275
        %v2280 = vmul.f32 %v2240, %v2275
        %v2281 = vmul.f32 %v2241, %v2275
        %v2282 = vmul.f32 %v2242, %v2275
        %v2283 = vmul.f32 %v2243, %v2275
        %v2284 = vmul.f32 %v2244, %v2275
        %v2285 = vmul.f32 %v2245, %v2275
        %v2286 = vmul.f32 %v2246, %v2275
        %v2287 = vmul.f32 %v2247, %v2275
        %v2288 = vmul.f32 %v2248, %v2275
        %v2289 = vmul.f32 %v2249, %v2275
        %v2290 = vmul.f32 %v2250, %v2275
        %v2291 = vmul.f32 %v2251, %v2275
        %v2292 = vmul.f32 %v2252, %v2275
        %v2293 = vmul.f32 %v2253, %v2275
        %v2294 = vmul.f32 %v2254, %v2275
        %v2295 = vmul.f32 %v2255, %v2275
        %v2296 = vmul.f32 %v2256, %v2275
        %v2297 = vmul.f32 %v2257, %v2275
        %v2298 = vmul.f32 %v2258, %v2275
        %v2299 = vmul.f32 %v2259, %v2275
        %v2300 = vmul.f32 %v2260, %v2275
        %v2301 = vmul.f32 %v2261, %v2275
        %v2302 = vmul.f32 %v2262, %v2275
        %v2303 = vmul.f32 %v2263, %v2275
        %v2304 = vmul.f32 %v2264, %v2275
        %v2305 = vmul.f32 %v2265, %v2275
        %v2306 = vmul.f32 %v2266, %v2275
        %v2307 = vmul.f32 %v2267, %v2275
        %v2308 = vmul.f32 %v2268, %v2275
        %s2309 = scalar_lea.vmem %s6, 1
        %v2310 = vld [vmem:[%s2309] sm:$0x1]
        %v2312 = vlaneseq
        %v2313 = vshrl.u32 %v2312, 7
        %v2314 = vsub.s32 0, %v2313
        %v2315 = vrot.slane %v2310, %v2314
        %v2317 = vadd.f32 %v2277, %v2315
        %v2318 = vadd.f32 %v2278, %v2315
        %v2319 = vadd.f32 %v2279, %v2315
        %v2320 = vadd.f32 %v2280, %v2315
        %v2321 = vadd.f32 %v2281, %v2315
        %v2322 = vadd.f32 %v2282, %v2315
        %v2323 = vadd.f32 %v2283, %v2315
        %v2324 = vadd.f32 %v2284, %v2315
        %v2325 = vadd.f32 %v2285, %v2315
        %v2326 = vadd.f32 %v2286, %v2315
        %v2327 = vadd.f32 %v2287, %v2315
        %v2328 = vadd.f32 %v2288, %v2315
        %v2329 = vadd.f32 %v2289, %v2315
        %v2330 = vadd.f32 %v2290, %v2315
        %v2331 = vadd.f32 %v2291, %v2315
        %v2332 = vadd.f32 %v2292, %v2315
        %v2333 = vadd.f32 %v2293, %v2315
        %v2334 = vadd.f32 %v2294, %v2315
        %v2335 = vadd.f32 %v2295, %v2315
        %v2336 = vadd.f32 %v2296, %v2315
        %v2337 = vadd.f32 %v2297, %v2315
        %v2338 = vadd.f32 %v2298, %v2315
        %v2339 = vadd.f32 %v2299, %v2315
        %v2340 = vadd.f32 %v2300, %v2315
        %v2341 = vadd.f32 %v2301, %v2315
        %v2342 = vadd.f32 %v2302, %v2315
        %v2343 = vadd.f32 %v2303, %v2315
        %v2344 = vadd.f32 %v2304, %v2315
        %v2345 = vadd.f32 %v2305, %v2315
        %v2346 = vadd.f32 %v2306, %v2315
        %v2347 = vadd.f32 %v2307, %v2315
        %v2348 = vadd.f32 %v2308, %v2315
        %vm2349 = vcmp.gt.f32.partialorder %v2317, 0.0
        %vm2350 = vcmp.gt.f32.partialorder %v2318, 0.0
        %vm2351 = vcmp.gt.f32.partialorder %v2319, 0.0
        %vm2352 = vcmp.gt.f32.partialorder %v2320, 0.0
        %vm2353 = vcmp.gt.f32.partialorder %v2321, 0.0
        %vm2354 = vcmp.gt.f32.partialorder %v2322, 0.0
        %vm2355 = vcmp.gt.f32.partialorder %v2323, 0.0
        %vm2356 = vcmp.gt.f32.partialorder %v2324, 0.0
        %vm2357 = vcmp.gt.f32.partialorder %v2325, 0.0
        %vm2358 = vcmp.gt.f32.partialorder %v2326, 0.0
        %vm2359 = vcmp.gt.f32.partialorder %v2327, 0.0
        %vm2360 = vcmp.gt.f32.partialorder %v2328, 0.0
        %vm2361 = vcmp.gt.f32.partialorder %v2329, 0.0
        %vm2362 = vcmp.gt.f32.partialorder %v2330, 0.0
        %vm2363 = vcmp.gt.f32.partialorder %v2331, 0.0
        %vm2364 = vcmp.gt.f32.partialorder %v2332, 0.0
        %vm2365 = vcmp.gt.f32.partialorder %v2333, 0.0
        %vm2366 = vcmp.gt.f32.partialorder %v2334, 0.0
        %vm2367 = vcmp.gt.f32.partialorder %v2335, 0.0
        %vm2368 = vcmp.gt.f32.partialorder %v2336, 0.0
        %vm2369 = vcmp.gt.f32.partialorder %v2337, 0.0
        %vm2370 = vcmp.gt.f32.partialorder %v2338, 0.0
        %vm2371 = vcmp.gt.f32.partialorder %v2339, 0.0
        %vm2372 = vcmp.gt.f32.partialorder %v2340, 0.0
        %vm2373 = vcmp.gt.f32.partialorder %v2341, 0.0
        %vm2374 = vcmp.gt.f32.partialorder %v2342, 0.0
        %vm2375 = vcmp.gt.f32.partialorder %v2343, 0.0
        %vm2376 = vcmp.gt.f32.partialorder %v2344, 0.0
        %vm2377 = vcmp.gt.f32.partialorder %v2345, 0.0
        %vm2378 = vcmp.gt.f32.partialorder %v2346, 0.0
        %vm2379 = vcmp.gt.f32.partialorder %v2347, 0.0
        %vm2380 = vcmp.gt.f32.partialorder %v2348, 0.0
        %v2381 = vmul.f32 %v2317, 0.01
        %v2382 = vmul.f32 %v2318, 0.01
        %v2383 = vmul.f32 %v2319, 0.01
        %v2384 = vmul.f32 %v2320, 0.01
        %v2385 = vmul.f32 %v2321, 0.01
        %v2386 = vmul.f32 %v2322, 0.01
        %v2387 = vmul.f32 %v2323, 0.01
        %v2388 = vmul.f32 %v2324, 0.01
        %v2389 = vmul.f32 %v2325, 0.01
        %v2390 = vmul.f32 %v2326, 0.01
        %v2391 = vmul.f32 %v2327, 0.01
        %v2392 = vmul.f32 %v2328, 0.01
        %v2393 = vmul.f32 %v2329, 0.01
        %v2394 = vmul.f32 %v2330, 0.01
        %v2395 = vmul.f32 %v2331, 0.01
        %v2396 = vmul.f32 %v2332, 0.01
        %v2397 = vmul.f32 %v2333, 0.01
        %v2398 = vmul.f32 %v2334, 0.01
        %v2399 = vmul.f32 %v2335, 0.01
        %v2400 = vmul.f32 %v2336, 0.01
        %v2401 = vmul.f32 %v2337, 0.01
        %v2402 = vmul.f32 %v2338, 0.01
        %v2403 = vmul.f32 %v2339, 0.01
        %v2404 = vmul.f32 %v2340, 0.01
        %v2405 = vmul.f32 %v2341, 0.01
        %v2406 = vmul.f32 %v2342, 0.01
        %v2407 = vmul.f32 %v2343, 0.01
        %v2408 = vmul.f32 %v2344, 0.01
        %v2409 = vmul.f32 %v2345, 0.01
        %v2410 = vmul.f32 %v2346, 0.01
        %v2411 = vmul.f32 %v2347, 0.01
        %v2412 = vmul.f32 %v2348, 0.01
        %v2413 = vsel %vm2349, %v2317, %v2381
        %v2414 = vsel %vm2350, %v2318, %v2382
        %v2415 = vsel %vm2351, %v2319, %v2383
        %v2416 = vsel %vm2352, %v2320, %v2384
        %v2417 = vsel %vm2353, %v2321, %v2385
        %v2418 = vsel %vm2354, %v2322, %v2386
        %v2419 = vsel %vm2355, %v2323, %v2387
        %v2420 = vsel %vm2356, %v2324, %v2388
        %v2421 = vsel %vm2357, %v2325, %v2389
        %v2422 = vsel %vm2358, %v2326, %v2390
        %v2423 = vsel %vm2359, %v2327, %v2391
        %v2424 = vsel %vm2360, %v2328, %v2392
        %v2425 = vsel %vm2361, %v2329, %v2393
        %v2426 = vsel %vm2362, %v2330, %v2394
        %v2427 = vsel %vm2363, %v2331, %v2395
        %v2428 = vsel %vm2364, %v2332, %v2396
        %v2429 = vsel %vm2365, %v2333, %v2397
        %v2430 = vsel %vm2366, %v2334, %v2398
        %v2431 = vsel %vm2367, %v2335, %v2399
        %v2432 = vsel %vm2368, %v2336, %v2400
        %v2433 = vsel %vm2369, %v2337, %v2401
        %v2434 = vsel %vm2370, %v2338, %v2402
        %v2435 = vsel %vm2371, %v2339, %v2403
        %v2436 = vsel %vm2372, %v2340, %v2404
        %v2437 = vsel %vm2373, %v2341, %v2405
        %v2438 = vsel %vm2374, %v2342, %v2406
        %v2439 = vsel %vm2375, %v2343, %v2407
        %v2440 = vsel %vm2376, %v2344, %v2408
        %v2441 = vsel %vm2377, %v2345, %v2409
        %v2442 = vsel %vm2378, %v2346, %v2410
        %v2443 = vsel %vm2379, %v2347, %v2411
        %v2444 = vsel %vm2380, %v2348, %v2412
        %v2445 = vpack.c.bf16 %v2414, %v2413
        %v2446 = vpack.c.bf16 %v2416, %v2415
        %v2447 = vpack.c.bf16 %v2418, %v2417
        %v2448 = vpack.c.bf16 %v2420, %v2419
        %v2449 = vpack.c.bf16 %v2422, %v2421
        %v2450 = vpack.c.bf16 %v2424, %v2423
        %v2451 = vpack.c.bf16 %v2426, %v2425
        %v2452 = vpack.c.bf16 %v2428, %v2427
        %v2453 = vpack.c.bf16 %v2430, %v2429
        %v2454 = vpack.c.bf16 %v2432, %v2431
        %v2455 = vpack.c.bf16 %v2434, %v2433
        %v2456 = vpack.c.bf16 %v2436, %v2435
        %v2457 = vpack.c.bf16 %v2438, %v2437
        %v2458 = vpack.c.bf16 %v2440, %v2439
        %v2459 = vpack.c.bf16 %v2442, %v2441
        %v2460 = vpack.c.bf16 %v2444, %v2443
        %v2461 = vld [vmem:[%s7] sm:$0xf]
        %v2462 = vld [vmem:[%s7 + $0x4] sm:$0xf]
        %v2463 = vld [vmem:[%s7 + $0x8] sm:$0xf]
        %v2464 = vld [vmem:[%s7 + $0xc] sm:$0xf]
        %v2465 = vld [vmem:[%s7 + $0x10] sm:$0xf]
        %v2466 = vld [vmem:[%s7 + $0x14] sm:$0xf]
        %v2467 = vld [vmem:[%s7 + $0x18] sm:$0xf]
        %v2468 = vld [vmem:[%s7 + $0x1c] sm:$0xf]
        %v2469 = vld [vmem:[%s7 + $0x20] sm:$0xf]
        %v2470 = vld [vmem:[%s7 + $0x24] sm:$0xf]
        %v2471 = vld [vmem:[%s7 + $0x28] sm:$0xf]
        %v2472 = vld [vmem:[%s7 + $0x2c] sm:$0xf]
        %v2473 = vld [vmem:[%s7 + $0x30] sm:$0xf]
        %v2474 = vld [vmem:[%s7 + $0x34] sm:$0xf]
        %v2475 = vld [vmem:[%s7 + $0x38] sm:$0xf]
        %v2476 = vld [vmem:[%s7 + $0x3c] sm:$0xf]
        %v2477 = vld [vmem:[%s8] sm:$0x1]
        %v2479 = vlaneseq
        %v2480 = vshrl.u32 %v2479, 7
        %v2481 = vsub.s32 0, %v2480
        %v2482 = vrot.slane %v2477, %v2481
        %v2500 = vunpack.c.l.b16 %v2461
        %v2501 = vunpack.c.l.b16 %v2462
        %v2502 = vunpack.c.l.b16 %v2463
        %v2503 = vunpack.c.l.b16 %v2464
        %v2504 = vunpack.c.l.b16 %v2465
        %v2505 = vunpack.c.l.b16 %v2466
        %v2506 = vunpack.c.l.b16 %v2467
        %v2507 = vunpack.c.l.b16 %v2468
        %v2508 = vunpack.c.l.b16 %v2469
        %v2509 = vunpack.c.l.b16 %v2470
        %v2510 = vunpack.c.l.b16 %v2471
        %v2511 = vunpack.c.l.b16 %v2472
        %v2512 = vunpack.c.l.b16 %v2473
        %v2513 = vunpack.c.l.b16 %v2474
        %v2514 = vunpack.c.l.b16 %v2475
        %v2515 = vunpack.c.l.b16 %v2476
        %v2516 = vpack.c.b16 %v2501, %v2500
        %v2517 = vpack.c.b16 %v2503, %v2502
        %v2518 = vpack.c.b16 %v2505, %v2504
        %v2519 = vpack.c.b16 %v2507, %v2506
        %v2520 = vpack.c.b16 %v2509, %v2508
        %v2521 = vpack.c.b16 %v2511, %v2510
        %v2522 = vpack.c.b16 %v2513, %v2512
        %v2523 = vpack.c.b16 %v2515, %v2514
        %2532 = vmatprep.subr.bf16.mxu0 0
        %2533 = vmatpush1.bf16.msra.mxu0 %v2516
        %2534 = vmatprep.subr.bf16.mxu0 0
        %2535 = vmatpush1.bf16.msra.mxu0 %v2517
        %2536 = vmatprep.subr.bf16.mxu0 0
        %2537 = vmatpush1.bf16.msra.mxu0 %v2518
        %2538 = vmatprep.subr.bf16.mxu0 0
        %2539 = vmatpush1.bf16.msra.mxu0 %v2519
        %2540 = vmatprep.subr.bf16.mxu0 0
        %2541 = vmatpush1.bf16.msra.mxu0 %v2520
        %2542 = vmatprep.subr.bf16.mxu0 0
        %2543 = vmatpush1.bf16.msra.mxu0 %v2521
        %2544 = vmatprep.subr.bf16.mxu0 0
        %2545 = vmatpush1.bf16.msra.mxu0 %v2522
        %2546 = vmatprep.subr.bf16.mxu0 0
        %2547 = vmatpush1.bf16.msra.mxu0 %v2523
        %2548 = vmatprep.subr.bf16.mxu0 0
        %2549 = vmatpush1.bf16.msra.mxu0 0
        %2550 = vmatprep.subr.bf16.mxu0 0
        %2551 = vmatpush1.bf16.msra.mxu0 0
        %2552 = vmatprep.subr.bf16.mxu0 0
        %2553 = vmatpush1.bf16.msra.mxu0 0
        %2554 = vmatprep.subr.bf16.mxu0 0
        %2555 = vmatpush1.bf16.msra.mxu0 0
        %2556 = vmatprep.subr.bf16.mxu0 0
        %2557 = vmatpush1.bf16.msra.mxu0 0
        %2558 = vmatprep.subr.bf16.mxu0 0
        %2559 = vmatpush1.bf16.msra.mxu0 0
        %2560 = vmatprep.subr.bf16.mxu0 0
        %2561 = vmatpush1.bf16.msra.mxu0 0
        %2562 = vmatprep.subr.bf16.mxu0 0
        %2563 = vmatpush1.bf16.msra.mxu0 0
        %2564 = vmatprep.mubr.bf16.mxu0 0
        %2565 = vmatmul.mubr.bf16.gmra.mrb[0].mxu0 %v2445
        %v2566 = vpop.f32.mrb[0].mxu0
        %v2567 = vadd.f32 %v2482, %v2566
        %v2568 = vpop.f32.mrb[0].mxu0
        %v2569 = vpop.f32.mrb[0].mxu0
        %v2570 = vadd.f32 %v2482, %v2569
        %v2571 = vpop.f32.mrb[0].mxu0
        %2572 = vmatprep.mubr.bf16.mxu0 0
        %2573 = vmatmul.mubr.bf16.gmra.mrb[0].mxu0 %v2446
        %v2574 = vpop.f32.mrb[0].mxu0
        %v2575 = vadd.f32 %v2482, %v2574
        %v2576 = vpop.f32.mrb[0].mxu0
        %v2577 = vpop.f32.mrb[0].mxu0
        %v2578 = vadd.f32 %v2482, %v2577
        %v2579 = vpop.f32.mrb[0].mxu0
        %2580 = vmatprep.mubr.bf16.mxu0 0
        %2581 = vmatmul.mubr.bf16.gmra.mrb[0].mxu0 %v2447
        %v2582 = vpop.f32.mrb[0].mxu0
        %v2583 = vadd.f32 %v2482, %v2582
        %v2584 = vpop.f32.mrb[0].mxu0
        %v2585 = vpop.f32.mrb[0].mxu0
        %v2586 = vadd.f32 %v2482, %v2585
        %v2587 = vpop.f32.mrb[0].mxu0
        %2588 = vmatprep.mubr.bf16.mxu0 0
        %2589 = vmatmul.mubr.bf16.gmra.mrb[0].mxu0 %v2448
        %v2590 = vpop.f32.mrb[0].mxu0
        %v2591 = vadd.f32 %v2482, %v2590
        %v2592 = vpop.f32.mrb[0].mxu0
        %v2593 = vpop.f32.mrb[0].mxu0
        %v2594 = vadd.f32 %v2482, %v2593
        %v2595 = vpop.f32.mrb[0].mxu0
        %2596 = vmatprep.mubr.bf16.mxu0 0
        %2597 = vmatmul.mubr.bf16.gmra.mrb[0].mxu0 %v2449
        %v2598 = vpop.f32.mrb[0].mxu0
        %v2599 = vadd.f32 %v2482, %v2598
        %v2600 = vpop.f32.mrb[0].mxu0
        %v2601 = vpop.f32.mrb[0].mxu0
        %v2602 = vadd.f32 %v2482, %v2601
        %v2603 = vpop.f32.mrb[0].mxu0
        %2604 = vmatprep.mubr.bf16.mxu0 0
        %2605 = vmatmul.mubr.bf16.gmra.mrb[0].mxu0 %v2450
        %v2606 = vpop.f32.mrb[0].mxu0
        %v2607 = vadd.f32 %v2482, %v2606
        %v2608 = vpop.f32.mrb[0].mxu0
        %v2609 = vpop.f32.mrb[0].mxu0
        %v2610 = vadd.f32 %v2482, %v2609
        %v2611 = vpop.f32.mrb[0].mxu0
        %2612 = vmatprep.mubr.bf16.mxu0 0
        %2613 = vmatmul.mubr.bf16.gmra.mrb[0].mxu0 %v2451
        %v2614 = vpop.f32.mrb[0].mxu0
        %v2615 = vadd.f32 %v2482, %v2614
        %v2616 = vpop.f32.mrb[0].mxu0
        %v2617 = vpop.f32.mrb[0].mxu0
        %v2618 = vadd.f32 %v2482, %v2617
        %v2619 = vpop.f32.mrb[0].mxu0
        %2620 = vmatprep.mubr.bf16.mxu0 0
        %2621 = vmatmul.mubr.bf16.gmra.mrb[0].mxu0 %v2452
        %v2622 = vpop.f32.mrb[0].mxu0
        %v2623 = vadd.f32 %v2482, %v2622
        %v2624 = vpop.f32.mrb[0].mxu0
        %v2625 = vpop.f32.mrb[0].mxu0
        %v2626 = vadd.f32 %v2482, %v2625
        %v2627 = vpop.f32.mrb[0].mxu0
        %2628 = vmatprep.mubr.bf16.mxu0 0
        %2629 = vmatmul.mubr.bf16.gmra.mrb[0].mxu0 %v2453
        %v2630 = vpop.f32.mrb[0].mxu0
        %v2631 = vadd.f32 %v2482, %v2630
        %v2632 = vpop.f32.mrb[0].mxu0
        %v2633 = vpop.f32.mrb[0].mxu0
        %v2634 = vadd.f32 %v2482, %v2633
        %v2635 = vpop.f32.mrb[0].mxu0
        %2636 = vmatprep.mubr.bf16.mxu0 0
        %2637 = vmatmul.mubr.bf16.gmra.mrb[0].mxu0 %v2454
        %v2638 = vpop.f32.mrb[0].mxu0
        %v2639 = vadd.f32 %v2482, %v2638
        %v2640 = vpop.f32.mrb[0].mxu0
        %v2641 = vpop.f32.mrb[0].mxu0
        %v2642 = vadd.f32 %v2482, %v2641
        %v2643 = vpop.f32.mrb[0].mxu0
        %2644 = vmatprep.mubr.bf16.mxu0 0
        %2645 = vmatmul.mubr.bf16.gmra.mrb[0].mxu0 %v2455
        %v2646 = vpop.f32.mrb[0].mxu0
        %v2647 = vadd.f32 %v2482, %v2646
        %v2648 = vpop.f32.mrb[0].mxu0
        %v2649 = vpop.f32.mrb[0].mxu0
        %v2650 = vadd.f32 %v2482, %v2649
        %v2651 = vpop.f32.mrb[0].mxu0
        %2652 = vmatprep.mubr.bf16.mxu0 0
        %2653 = vmatmul.mubr.bf16.gmra.mrb[0].mxu0 %v2456
        %v2654 = vpop.f32.mrb[0].mxu0
        %v2655 = vadd.f32 %v2482, %v2654
        %v2656 = vpop.f32.mrb[0].mxu0
        %v2657 = vpop.f32.mrb[0].mxu0
        %v2658 = vadd.f32 %v2482, %v2657
        %v2659 = vpop.f32.mrb[0].mxu0
        %2660 = vmatprep.mubr.bf16.mxu0 0
        %2661 = vmatmul.mubr.bf16.gmra.mrb[0].mxu0 %v2457
        %v2662 = vpop.f32.mrb[0].mxu0
        %v2663 = vadd.f32 %v2482, %v2662
        %v2664 = vpop.f32.mrb[0].mxu0
        %v2665 = vpop.f32.mrb[0].mxu0
        %v2666 = vadd.f32 %v2482, %v2665
        %v2667 = vpop.f32.mrb[0].mxu0
        %2668 = vmatprep.mubr.bf16.mxu0 0
        %2669 = vmatmul.mubr.bf16.gmra.mrb[0].mxu0 %v2458
        %v2670 = vpop.f32.mrb[0].mxu0
        %v2671 = vadd.f32 %v2482, %v2670
        %v2672 = vpop.f32.mrb[0].mxu0
        %v2673 = vpop.f32.mrb[0].mxu0
        %v2674 = vadd.f32 %v2482, %v2673
        %v2675 = vpop.f32.mrb[0].mxu0
        %2676 = vmatprep.mubr.bf16.mxu0 0
        %2677 = vmatmul.mubr.bf16.gmra.mrb[0].mxu0 %v2459
        %v2678 = vpop.f32.mrb[0].mxu0
        %v2679 = vadd.f32 %v2482, %v2678
        %v2680 = vpop.f32.mrb[0].mxu0
        %v2681 = vpop.f32.mrb[0].mxu0
        %v2682 = vadd.f32 %v2482, %v2681
        %v2683 = vpop.f32.mrb[0].mxu0
        %2684 = vmatprep.mubr.bf16.mxu0 0
        %2685 = vmatmul.mubr.bf16.gmra.mrb[0].mxu0 %v2460
        %v2686 = vpop.f32.mrb[0].mxu0
        %v2687 = vadd.f32 %v2482, %v2686
        %v2688 = vpop.f32.mrb[0].mxu0
        %v2689 = vpop.f32.mrb[0].mxu0
        %v2690 = vadd.f32 %v2482, %v2689
        %v2691 = vpop.f32.mrb[0].mxu0
        %2692 = vdwg.mxu0
        %v2693 = vpack.c.bf16 %v2570, %v2567
        %v2694 = vpack.c.bf16 %v2578, %v2575
        %v2695 = vpack.c.bf16 %v2586, %v2583
        %v2696 = vpack.c.bf16 %v2594, %v2591
        %v2697 = vpack.c.bf16 %v2602, %v2599
        %v2698 = vpack.c.bf16 %v2610, %v2607
        %v2699 = vpack.c.bf16 %v2618, %v2615
        %v2700 = vpack.c.bf16 %v2626, %v2623
        %v2701 = vpack.c.bf16 %v2634, %v2631
        %v2702 = vpack.c.bf16 %v2642, %v2639
        %v2703 = vpack.c.bf16 %v2650, %v2647
        %v2704 = vpack.c.bf16 %v2658, %v2655
        %v2705 = vpack.c.bf16 %v2666, %v2663
        %v2706 = vpack.c.bf16 %v2674, %v2671
        %v2707 = vpack.c.bf16 %v2682, %v2679
        %v2708 = vpack.c.bf16 %v2690, %v2687
        %v2725 = vunpack.c.l.b16 %v2693
        %v2726 = vunpack.c.h.b16 %v2693
        %v2727 = vunpack.c.l.b16 %v2694
        %v2728 = vunpack.c.h.b16 %v2694
        %v2729 = vunpack.c.l.b16 %v2695
        %v2730 = vunpack.c.h.b16 %v2695
        %v2731 = vunpack.c.l.b16 %v2696
        %v2732 = vunpack.c.h.b16 %v2696
        %v2733 = vunpack.c.l.b16 %v2697
        %v2734 = vunpack.c.h.b16 %v2697
        %v2735 = vunpack.c.l.b16 %v2698
        %v2736 = vunpack.c.h.b16 %v2698
        %v2737 = vunpack.c.l.b16 %v2699
        %v2738 = vunpack.c.h.b16 %v2699
        %v2739 = vunpack.c.l.b16 %v2700
        %v2740 = vunpack.c.h.b16 %v2700
        %v2741 = vunpack.c.l.b16 %v2701
        %v2742 = vunpack.c.h.b16 %v2701
        %v2743 = vunpack.c.l.b16 %v2702
        %v2744 = vunpack.c.h.b16 %v2702
        %v2745 = vunpack.c.l.b16 %v2703
        %v2746 = vunpack.c.h.b16 %v2703
        %v2747 = vunpack.c.l.b16 %v2704
        %v2748 = vunpack.c.h.b16 %v2704
        %v2749 = vunpack.c.l.b16 %v2705
        %v2750 = vunpack.c.h.b16 %v2705
        %v2751 = vunpack.c.l.b16 %v2706
        %v2752 = vunpack.c.h.b16 %v2706
        %v2753 = vunpack.c.l.b16 %v2707
        %v2754 = vunpack.c.h.b16 %v2707
        %v2755 = vunpack.c.l.b16 %v2708
        %v2756 = vunpack.c.h.b16 %v2708
        %v2757 = vpack.c.b16 %v2725, %v2725
        %v2758 = vpack.c.b16 %v2726, %v2726
        %v2759 = vpack.c.b16 %v2727, %v2727
        %v2760 = vpack.c.b16 %v2728, %v2728
        %v2761 = vpack.c.b16 %v2729, %v2729
        %v2762 = vpack.c.b16 %v2730, %v2730
        %v2763 = vpack.c.b16 %v2731, %v2731
        %v2764 = vpack.c.b16 %v2732, %v2732
        %v2765 = vpack.c.b16 %v2733, %v2733
        %v2766 = vpack.c.b16 %v2734, %v2734
        %v2767 = vpack.c.b16 %v2735, %v2735
        %v2768 = vpack.c.b16 %v2736, %v2736
        %v2769 = vpack.c.b16 %v2737, %v2737
        %v2770 = vpack.c.b16 %v2738, %v2738
        %v2771 = vpack.c.b16 %v2739, %v2739
        %v2772 = vpack.c.b16 %v2740, %v2740
        %v2773 = vpack.c.b16 %v2741, %v2741
        %v2774 = vpack.c.b16 %v2742, %v2742
        %v2775 = vpack.c.b16 %v2743, %v2743
        %v2776 = vpack.c.b16 %v2744, %v2744
        %v2777 = vpack.c.b16 %v2745, %v2745
        %v2778 = vpack.c.b16 %v2746, %v2746
        %v2779 = vpack.c.b16 %v2747, %v2747
        %v2780 = vpack.c.b16 %v2748, %v2748
        %v2781 = vpack.c.b16 %v2749, %v2749
        %v2782 = vpack.c.b16 %v2750, %v2750
        %v2783 = vpack.c.b16 %v2751, %v2751
        %v2784 = vpack.c.b16 %v2752, %v2752
        %v2785 = vpack.c.b16 %v2753, %v2753
        %v2786 = vpack.c.b16 %v2754, %v2754
        %v2787 = vpack.c.b16 %v2755, %v2755
        %v2788 = vpack.c.b16 %v2756, %v2756
        %2821 = vst [vmem:[%s326] sm:$0xf] %v2757
        %2822 = vst [vmem:[%s326 + $0x4] sm:$0xf] %v2758
        %2823 = vst [vmem:[%s326 + $0x8] sm:$0xf] %v2759
        %2824 = vst [vmem:[%s326 + $0xc] sm:$0xf] %v2760
        %2825 = vst [vmem:[%s326 + $0x10] sm:$0xf] %v2761
        %2826 = vst [vmem:[%s326 + $0x14] sm:$0xf] %v2762
        %2827 = vst [vmem:[%s326 + $0x18] sm:$0xf] %v2763
        %2828 = vst [vmem:[%s326 + $0x1c] sm:$0xf] %v2764
        %2829 = vst [vmem:[%s326 + $0x20] sm:$0xf] %v2765
        %2830 = vst [vmem:[%s326 + $0x24] sm:$0xf] %v2766
        %2831 = vst [vmem:[%s326 + $0x28] sm:$0xf] %v2767
        %2832 = vst [vmem:[%s326 + $0x2c] sm:$0xf] %v2768
        %2833 = vst [vmem:[%s326 + $0x30] sm:$0xf] %v2769
        %2834 = vst [vmem:[%s326 + $0x34] sm:$0xf] %v2770
        %2835 = vst [vmem:[%s326 + $0x38] sm:$0xf] %v2771
        %2836 = vst [vmem:[%s326 + $0x3c] sm:$0xf] %v2772
        %2837 = vst [vmem:[%s326 + $0x40] sm:$0xf] %v2773
        %2838 = vst [vmem:[%s326 + $0x44] sm:$0xf] %v2774
        %2839 = vst [vmem:[%s326 + $0x48] sm:$0xf] %v2775
        %2840 = vst [vmem:[%s326 + $0x4c] sm:$0xf] %v2776
        %2841 = vst [vmem:[%s326 + $0x50] sm:$0xf] %v2777
        %2842 = vst [vmem:[%s326 + $0x54] sm:$0xf] %v2778
        %2843 = vst [vmem:[%s326 + $0x58] sm:$0xf] %v2779
        %2844 = vst [vmem:[%s326 + $0x5c] sm:$0xf] %v2780
        %2845 = vst [vmem:[%s326 + $0x60] sm:$0xf] %v2781
        %2846 = vst [vmem:[%s326 + $0x64] sm:$0xf] %v2782
        %2847 = vst [vmem:[%s326 + $0x68] sm:$0xf] %v2783
        %2848 = vst [vmem:[%s326 + $0x6c] sm:$0xf] %v2784
        %2849 = vst [vmem:[%s326 + $0x70] sm:$0xf] %v2785
        %2850 = vst [vmem:[%s326 + $0x74] sm:$0xf] %v2786
        %2851 = vst [vmem:[%s326 + $0x78] sm:$0xf] %v2787
        %2852 = vst [vmem:[%s326 + $0x7c] sm:$0xf] %v2788
        %s2853 = sand.u32 %s225, 1
        %s2854 = scalar_lea.sflag [#allocation3], %s2853
        %s2855 = sand.u32 %s225, 1
        %s2856 = smul.addr %s2855, 128
        %s2857 = scalar_lea.vmem [#allocation2], %s2856
        // Predicated region
        $region57: #{tpu_custom_call.1} parent=55 // pred_check
          %p2858 = pneg %p235
        $region58: #{tpu_custom_call.1} parent=55 // pred_check_branch
          %2860 = sbr.rel (%p2858) target = $region60
        $region59: #{tpu_custom_call.1} parent=55 // pred_region
          %s2861 = smul.u32 32, %s23
          %s2863 = ssub.s32 2048, 2048
          %2864 = vsyncadd %s2854, %s2863
          %s2865 = smul.addr %s2861, 64
          %s2866 = scalar_lea.hbm %s9, %s2865
          %s2867 = sshll.u32 %s2857, 4
          %s2868 = int_to_ptr.vmem [resolvable:$true] %s2867
          %2873 = dma.vmem_to_hbm [thread:$0]  %s2868, 2048, %s2866, %s2854, 64, 64, 4
        $region60: #{tpu_custom_call.1} parent=55 // pred_fallthru
          _
      $region56: #{tpu_custom_call.1} parent=5 // pred_fallthru
        _
      %p2874 = scmp.le.s32.totalorder 2, %s18
      // Predicated region
      $region61: #{tpu_custom_call.1} parent=5 // pred_check
        %p2875 = pneg %p2874
      $region62: #{tpu_custom_call.1} parent=5 // pred_check_branch
        %2877 = sbr.rel (%p2875) target = $region64
      $region63: #{tpu_custom_call.1} parent=5 // pred_region
        %s2878 = ssub.s32 %s18, 2
        // Predicated region
        $region65: #{tpu_custom_call.1} parent=63 // pred_check
          %p2879 = pneg %p241
        $region66: #{tpu_custom_call.1} parent=63 // pred_check_branch
          %2881 = sbr.rel (%p2879) target = $region68
        $region67: #{tpu_custom_call.1} parent=63 // pred_region
          %s2882 = sand.u32 %s226, 1
          %s2883 = scalar_lea.sflag [#allocation3], %s2882
          %s2884 = sand.u32 %s226, 1
          %s2885 = smul.addr %s2884, 128
          %s2886 = scalar_lea.vmem [#allocation2], %s2885
          %2887 = dma.done %s2883, 2048
        $region68: #{tpu_custom_call.1} parent=63 // pred_fallthru
          _
      $region64: #{tpu_custom_call.1} parent=5 // pred_fallthru
        _
    $region6: #{tpu_custom_call.1} parent=1 // loop_footer
      %s22 = sadd.s32 1, %s18
    $region7: #{tpu_custom_call.1} parent=1 // loop_footer_branch
      %17 = sbr.rel target = $region3
    $region8: #{tpu_custom_call.1} parent=1 // loop_exit
      _
    %2888 = vsyncpa [#allocation3], 1
    %s2889 = scalar_lea.sflag [#allocation3], 1
    %2890 = vsyncpa %s2889, 1

</llo_original>
